<compile_context>
chip_gen: v6e
topology: v6e:2x2x1
jax: 0.10.0
libtpu: 0.0.40
codegen_flags: <defaults>
</compile_context>

<pallas_src>
import functools

import jax
import jax.numpy as jnp
from jax.experimental import pallas as pl
from jax.experimental.pallas import tpu as pltpu

LANE = 128
SUBLANE = 8
NUM_CLASSES = 10


def _round_up(x: int, m: int) -> int:
    return (x + m - 1) // m * m


# ---------------------------------------------------------------------------
# Fused kernel: 4 SoftFolds + cut Linear, activations stay on-chip.
# ---------------------------------------------------------------------------
def _origami_soft4_kernel(x_ref, n_ref, b_ref, s_ref, wc_ref, bc_ref, o_ref,
                          *, num_folds: int):
    x = x_ref[...]                                   # (TB, WPAD) f32
    n_all = n_ref[...]                               # (L, WPAD) f32, zero-padded rows

    # Static Python loop over layers: each fold is VPU mul + XLU row-reduce + EUP
    # sigmoid + VPU axpy; intermediate activations never leave vregs/VMEM.
    for l in range(num_folds):
        n = n_all[l:l + 1, :]                        # (1, WPAD)
        norm_sq = jnp.sum(n * n, axis=1, keepdims=True)          # (1, 1)
        z = jnp.sum(x * n, axis=1, keepdims=True) + b_ref[l]     # (TB, 1)
        fold_amt = z * jax.nn.sigmoid(z)             # soft hinge (SiLU) crease amount
        coef = fold_amt * (s_ref[l] / norm_sq)       # (TB, 1): stretch * amt / |n|^2
        x = x - coef * n                             # soft reflection update

    # Cut layer on the MXU; bias added once in the epilogue, output lane-dense.
    y = jnp.dot(x, wc_ref[...], preferred_element_type=jnp.float32) + bc_ref[...]
    o_ref[...] = y.astype(o_ref.dtype)


# ---------------------------------------------------------------------------
# JAX wrapper: padding / tiling plumbing around the fused kernel.
# ---------------------------------------------------------------------------
def origami_soft4_forward(params, x):
    """Mirrors OrigamiSoft4.forward: flatten (row-major) then f1..f4 then cut."""
    if x.ndim > 2:
        x = x.reshape(x.shape[0], -1)
    x = x.astype(jnp.float32)
    B, D = x.shape

    folds = params['folds']
    L = len(folds)
    widths = [f['n'].shape[0] for f in folds]
    cut_w = params['cut_w']                          # (W_last, num_classes)
    cut_b = params['cut_b']                          # (num_classes,)
    num_classes = cut_w.shape[1]

    # Lane-dense common feature width; zero rows of n beyond each layer's width keep
    # padded activation columns exactly inert (same math as per-layer zero padding).
    WPAD = _round_up(max(widths + [D, cut_w.shape[0]]), LANE)
    n_stack = jnp.zeros((L, WPAD), jnp.float32)
    for l, f in enumerate(folds):
        n_stack = n_stack.at[l, :widths[l]].set(f['n'].astype(jnp.float32))
    b_vec = jnp.stack([f['b'] for f in folds]).astype(jnp.float32)        # (L,)
    s_vec = jnp.stack([f['stretch'] for f in folds]).astype(jnp.float32)  # (L,)

    # Lane-dense output width (avoids masked vst.msk partial stores for out=10).
    NPAD = _round_up(num_classes, LANE)
    wc = jnp.zeros((WPAD, NPAD), jnp.float32)
    wc = wc.at[:cut_w.shape[0], :num_classes].set(cut_w.astype(jnp.float32))
    bc = jnp.zeros((1, NPAD), jnp.float32)
    bc = bc.at[0, :num_classes].set(cut_b.astype(jnp.float32))

    # Batch padding / tiling: >= 8 sublanes; tile by 128 rows for large batches so
    # the "parallel" grid axis can be sharded across TensorCores (v7x megacore).
    if B <= LANE:
        B_pad = max(SUBLANE, _round_up(B, SUBLANE))
        TB = B_pad
    else:
        B_pad = _round_up(B, LANE)
        TB = LANE
    x_p = jnp.zeros((B_pad, WPAD), jnp.float32).at[:B, :D].set(x)

    grid = (B_pad // TB,)
    kernel = functools.partial(_origami_soft4_kernel, num_folds=L)

    flops = 2 * B_pad * WPAD * NPAD + 5 * L * B_pad * WPAD
    bytes_accessed = 4 * (B_pad * WPAD + L * WPAD + 2 * L
                          + WPAD * NPAD + NPAD + B_pad * NPAD)

    out = pl.pallas_call(
        kernel,
        out_shape=jax.ShapeDtypeStruct((B_pad, NPAD), jnp.float32),
        grid_spec=pltpu.PrefetchScalarGridSpec(
            num_scalar_prefetch=0,
            grid=grid,
            in_specs=[
                pl.BlockSpec((TB, WPAD), lambda i: (i, 0)),     # activations (tiled on B)
                pl.BlockSpec((L, WPAD), lambda i: (0, 0)),      # fold normals (resident)
                pl.BlockSpec(memory_space=pltpu.MemorySpace.SMEM),  # fold biases
                pl.BlockSpec(memory_space=pltpu.MemorySpace.SMEM),  # fold stretches
                pl.BlockSpec((WPAD, NPAD), lambda i: (0, 0)),   # cut weight (resident)
                pl.BlockSpec((1, NPAD), lambda i: (0, 0)),      # cut bias
            ],
            out_specs=pl.BlockSpec((TB, NPAD), lambda i: (i, 0)),
        ),
        compiler_params=pltpu.CompilerParams(
            dimension_semantics=("parallel",),
            # Budgeted against v7x (64 MiB physical / 32 MiB scoped default); actual
            # per-step footprint here is ~1.3 MiB double-buffered.
            vmem_limit_bytes=32 * 1024 * 1024,
        ),
        cost_estimate=pl.CostEstimate(
            flops=int(flops),
            transcendentals=int(L * B_pad),
            bytes_accessed=int(bytes_accessed),
        ),
    )(x_p, n_stack, b_vec, s_vec, wc, bc)

    return out[:B, :num_classes]


# ---------------------------------------------------------------------------
# Parameter init (PyTorch-Linear-style uniform +-1/sqrt(width), deterministic).
# ---------------------------------------------------------------------------
def init_origami_soft4_params(key, input_size: int, num_classes: int = NUM_CLASSES):
    widths = [input_size,
              int(input_size * 1.05),
              int(input_size * 1.1),
              int(input_size * 1.1)]
    keys = jax.random.split(key, len(widths) + 1)

    folds = []
    for kf, w in zip(keys[:-1], widths):
        kn, kb = jax.random.split(kf)
        bound = 1.0 / float(w) ** 0.5
        folds.append({
            'n': jax.random.uniform(kn, (w,), jnp.float32, -bound, bound),
            'b': jax.random.uniform(kb, (), jnp.float32, -bound, bound),
            'stretch': jnp.float32(1.0),     # has_stretch=True -> learnable scale
        })

    kcw, kcb = jax.random.split(keys[-1])
    w_last = widths[-1]
    bound = 1.0 / float(w_last) ** 0.5
    # PyTorch stores Linear weight as (out, in); we keep its transpose (in, out).
    cut_w = jax.random.uniform(kcw, (w_last, num_classes), jnp.float32, -bound, bound)
    cut_b = jax.random.uniform(kcb, (num_classes,), jnp.float32, -bound, bound)
    return {'folds': folds, 'cut_w': cut_w, 'cut_b': cut_b}


# ---------------------------------------------------------------------------
# Pure-JAX reference (same SoftFold definition) for correctness checking.
# ---------------------------------------------------------------------------
def origami_soft4_reference(params, x):
    if x.ndim > 2:
        x = x.reshape(x.shape[0], -1)
    x = x.astype(jnp.float32)
    for f in params['folds']:
        n = f['n']
        w = n.shape[0]
        if x.shape[1] < w:
            x = jnp.pad(x, ((0, 0), (0, w - x.shape[1])))
        z = x @ n + f['b']                               # (B,)
        fold_amt = z * jax.nn.sigmoid(z)
        x = x - (f['stretch'] * fold_amt / jnp.sum(n * n))[:, None] * n[None, :]
    return x @ params['cut_w'] + params['cut_b']


if __name__ == "__main__":
    key = jax.random.PRNGKey(0)
    k_in, k_param = jax.random.split(key)

    # Small NCHW input consistent with the flatten: (2, 4, 16, 16) -> input_size=1024.
    B, C, H, W = 2, 4, 16, 16
    input_size = C * H * W

    x = jax.random.normal(k_in, (B, C, H, W), dtype=jnp.float32)
    params = init_origami_soft4_params(k_param, input_size)

    out = origami_soft4_forward(params, x)
    out = jax.block_until_ready(out)

    ref = origami_soft4_reference(params, x)
    assert out.shape == (B, NUM_CLASSES), out.shape
    assert jnp.allclose(out, ref, atol=1e-4, rtol=1e-4), (
        "mismatch vs reference, max abs diff = %e"
        % float(jnp.max(jnp.abs(out - ref))))

    print("KERNEL_OK")
</pallas_src>

<mosaic_0001>
module attributes {stable_mosaic.version = 11 : i64} {
  func.func @_origami_soft4_kernel(%arg0: i32, %arg1: memref<8x1152xf32, #tpu.memory_space<vmem>>, %arg2: memref<4x1152xf32, #tpu.memory_space<vmem>>, %arg3: memref<4xf32, #tpu.memory_space<smem>>, %arg4: memref<4xf32, #tpu.memory_space<smem>>, %arg5: memref<1152x128xf32, #tpu.memory_space<vmem>>, %arg6: memref<1x128xf32, #tpu.memory_space<vmem>>, %arg7: memref<8x128xf32, #tpu.memory_space<vmem>>) attributes {dimension_semantics = [#tpu.dimension_semantics<parallel>], iteration_bounds = array<i64: 1>, scalar_prefetch = 0 : i64, scratch_operands = 0 : i64, tpu.core_type = #tpu.core_type<tc>, window_params = [{transform_indices = @transform_0, window_bounds = array<i64: 8, 1152>}, {pipeline_mode = #tpu.pipeline_mode<synchronous>, transform_indices = @transform_1, window_bounds = array<i64: 4, 1152>}, {transform_indices = @transform_2, window_bounds = array<i64: 4>}, {transform_indices = @transform_3, window_bounds = array<i64: 4>}, {pipeline_mode = #tpu.pipeline_mode<synchronous>, transform_indices = @transform_4, window_bounds = array<i64: 1152, 128>}, {pipeline_mode = #tpu.pipeline_mode<synchronous>, transform_indices = @transform_5, window_bounds = array<i64: 1, 128>}, {transform_indices = @transform_6, window_bounds = array<i64: 8, 128>}]} {
    %c0 = arith.constant 0 : index
    %c0_0 = arith.constant 0 : index
    %0 = vector.load %arg1[%c0, %c0_0] : memref<8x1152xf32, #tpu.memory_space<vmem>>, vector<8x1152xf32>
    %c0_1 = arith.constant 0 : index
    %c0_2 = arith.constant 0 : index
    %1 = vector.load %arg2[%c0_1, %c0_2] : memref<4x1152xf32, #tpu.memory_space<vmem>>, vector<4x1152xf32>
    %2 = vector.extract_strided_slice %1 {offsets = [0, 0], sizes = [1, 1152], strides = [1, 1]} : vector<4x1152xf32> to vector<1x1152xf32>
    %3 = arith.mulf %2, %2 : vector<1x1152xf32>
    %cst = arith.constant dense<0.000000e+00> : vector<1xf32>
    %4 = vector.multi_reduction <add>, %3, %cst [1] : vector<1x1152xf32> to vector<1xf32>
    %5 = vector.shape_cast %4 : vector<1xf32> to vector<1x1xf32>
    %6 = vector.broadcast %2 : vector<1x1152xf32> to vector<8x1152xf32>
    %7 = arith.mulf %0, %6 : vector<8x1152xf32>
    %cst_3 = arith.constant dense<0.000000e+00> : vector<8xf32>
    %8 = vector.multi_reduction <add>, %7, %cst_3 [1] : vector<8x1152xf32> to vector<8xf32>
    %9 = vector.shape_cast %8 : vector<8xf32> to vector<8x1xf32>
    %c0_4 = arith.constant 0 : index
    %10 = memref.load %arg3[%c0_4] : memref<4xf32, #tpu.memory_space<smem>>
    %11 = vector.broadcast %10 : f32 to vector<8x1xf32>
    %12 = arith.addf %9, %11 : vector<8x1xf32>
    %13 = arith.negf %12 : vector<8x1xf32>
    %14 = math.exp %13 : vector<8x1xf32>
    %cst_5 = arith.constant 1.000000e+00 : f32
    %15 = vector.broadcast %cst_5 : f32 to vector<8x1xf32>
    %16 = arith.addf %15, %14 : vector<8x1xf32>
    %17 = arith.divf %15, %16 : vector<8x1xf32>
    %18 = arith.mulf %12, %17 : vector<8x1xf32>
    %c0_6 = arith.constant 0 : index
    %19 = memref.load %arg4[%c0_6] : memref<4xf32, #tpu.memory_space<smem>>
    %20 = vector.broadcast %19 : f32 to vector<1x1xf32>
    %21 = arith.divf %20, %5 : vector<1x1xf32>
    %22 = vector.broadcast %21 : vector<1x1xf32> to vector<8x1xf32>
    %23 = arith.mulf %18, %22 : vector<8x1xf32>
    %24 = vector.broadcast %23 : vector<8x1xf32> to vector<8x1152xf32>
    %25 = vector.broadcast %2 : vector<1x1152xf32> to vector<8x1152xf32>
    %26 = arith.mulf %24, %25 : vector<8x1152xf32>
    %27 = arith.subf %0, %26 : vector<8x1152xf32>
    %28 = vector.extract_strided_slice %1 {offsets = [1, 0], sizes = [1, 1152], strides = [1, 1]} : vector<4x1152xf32> to vector<1x1152xf32>
    %29 = arith.mulf %28, %28 : vector<1x1152xf32>
    %cst_7 = arith.constant dense<0.000000e+00> : vector<1xf32>
    %30 = vector.multi_reduction <add>, %29, %cst_7 [1] : vector<1x1152xf32> to vector<1xf32>
    %31 = vector.shape_cast %30 : vector<1xf32> to vector<1x1xf32>
    %32 = vector.broadcast %28 : vector<1x1152xf32> to vector<8x1152xf32>
    %33 = arith.mulf %27, %32 : vector<8x1152xf32>
    %cst_8 = arith.constant dense<0.000000e+00> : vector<8xf32>
    %34 = vector.multi_reduction <add>, %33, %cst_8 [1] : vector<8x1152xf32> to vector<8xf32>
    %35 = vector.shape_cast %34 : vector<8xf32> to vector<8x1xf32>
    %c1 = arith.constant 1 : index
    %36 = memref.load %arg3[%c1] : memref<4xf32, #tpu.memory_space<smem>>
    %37 = vector.broadcast %36 : f32 to vector<8x1xf32>
    %38 = arith.addf %35, %37 : vector<8x1xf32>
    %39 = arith.negf %38 : vector<8x1xf32>
    %40 = math.exp %39 : vector<8x1xf32>
    %cst_9 = arith.constant 1.000000e+00 : f32
    %41 = vector.broadcast %cst_9 : f32 to vector<8x1xf32>
    %42 = arith.addf %41, %40 : vector<8x1xf32>
    %43 = arith.divf %41, %42 : vector<8x1xf32>
    %44 = arith.mulf %38, %43 : vector<8x1xf32>
    %c1_10 = arith.constant 1 : index
    %45 = memref.load %arg4[%c1_10] : memref<4xf32, #tpu.memory_space<smem>>
    %46 = vector.broadcast %45 : f32 to vector<1x1xf32>
    %47 = arith.divf %46, %31 : vector<1x1xf32>
    %48 = vector.broadcast %47 : vector<1x1xf32> to vector<8x1xf32>
    %49 = arith.mulf %44, %48 : vector<8x1xf32>
    %50 = vector.broadcast %49 : vector<8x1xf32> to vector<8x1152xf32>
    %51 = vector.broadcast %28 : vector<1x1152xf32> to vector<8x1152xf32>
    %52 = arith.mulf %50, %51 : vector<8x1152xf32>
    %53 = arith.subf %27, %52 : vector<8x1152xf32>
    %54 = vector.extract_strided_slice %1 {offsets = [2, 0], sizes = [1, 1152], strides = [1, 1]} : vector<4x1152xf32> to vector<1x1152xf32>
    %55 = arith.mulf %54, %54 : vector<1x1152xf32>
    %cst_11 = arith.constant dense<0.000000e+00> : vector<1xf32>
    %56 = vector.multi_reduction <add>, %55, %cst_11 [1] : vector<1x1152xf32> to vector<1xf32>
    %57 = vector.shape_cast %56 : vector<1xf32> to vector<1x1xf32>
    %58 = vector.broadcast %54 : vector<1x1152xf32> to vector<8x1152xf32>
    %59 = arith.mulf %53, %58 : vector<8x1152xf32>
    %cst_12 = arith.constant dense<0.000000e+00> : vector<8xf32>
    %60 = vector.multi_reduction <add>, %59, %cst_12 [1] : vector<8x1152xf32> to vector<8xf32>
    %61 = vector.shape_cast %60 : vector<8xf32> to vector<8x1xf32>
    %c2 = arith.constant 2 : index
    %62 = memref.load %arg3[%c2] : memref<4xf32, #tpu.memory_space<smem>>
    %63 = vector.broadcast %62 : f32 to vector<8x1xf32>
    %64 = arith.addf %61, %63 : vector<8x1xf32>
    %65 = arith.negf %64 : vector<8x1xf32>
    %66 = math.exp %65 : vector<8x1xf32>
    %cst_13 = arith.constant 1.000000e+00 : f32
    %67 = vector.broadcast %cst_13 : f32 to vector<8x1xf32>
    %68 = arith.addf %67, %66 : vector<8x1xf32>
    %69 = arith.divf %67, %68 : vector<8x1xf32>
    %70 = arith.mulf %64, %69 : vector<8x1xf32>
    %c2_14 = arith.constant 2 : index
    %71 = memref.load %arg4[%c2_14] : memref<4xf32, #tpu.memory_space<smem>>
    %72 = vector.broadcast %71 : f32 to vector<1x1xf32>
    %73 = arith.divf %72, %57 : vector<1x1xf32>
    %74 = vector.broadcast %73 : vector<1x1xf32> to vector<8x1xf32>
    %75 = arith.mulf %70, %74 : vector<8x1xf32>
    %76 = vector.broadcast %75 : vector<8x1xf32> to vector<8x1152xf32>
    %77 = vector.broadcast %54 : vector<1x1152xf32> to vector<8x1152xf32>
    %78 = arith.mulf %76, %77 : vector<8x1152xf32>
    %79 = arith.subf %53, %78 : vector<8x1152xf32>
    %80 = vector.extract_strided_slice %1 {offsets = [3, 0], sizes = [1, 1152], strides = [1, 1]} : vector<4x1152xf32> to vector<1x1152xf32>
    %81 = arith.mulf %80, %80 : vector<1x1152xf32>
    %cst_15 = arith.constant dense<0.000000e+00> : vector<1xf32>
    %82 = vector.multi_reduction <add>, %81, %cst_15 [1] : vector<1x1152xf32> to vector<1xf32>
    %83 = vector.shape_cast %82 : vector<1xf32> to vector<1x1xf32>
    %84 = vector.broadcast %80 : vector<1x1152xf32> to vector<8x1152xf32>
    %85 = arith.mulf %79, %84 : vector<8x1152xf32>
    %cst_16 = arith.constant dense<0.000000e+00> : vector<8xf32>
    %86 = vector.multi_reduction <add>, %85, %cst_16 [1] : vector<8x1152xf32> to vector<8xf32>
    %87 = vector.shape_cast %86 : vector<8xf32> to vector<8x1xf32>
    %c3 = arith.constant 3 : index
    %88 = memref.load %arg3[%c3] : memref<4xf32, #tpu.memory_space<smem>>
    %89 = vector.broadcast %88 : f32 to vector<8x1xf32>
    %90 = arith.addf %87, %89 : vector<8x1xf32>
    %91 = arith.negf %90 : vector<8x1xf32>
    %92 = math.exp %91 : vector<8x1xf32>
    %cst_17 = arith.constant 1.000000e+00 : f32
    %93 = vector.broadcast %cst_17 : f32 to vector<8x1xf32>
    %94 = arith.addf %93, %92 : vector<8x1xf32>
    %95 = arith.divf %93, %94 : vector<8x1xf32>
    %96 = arith.mulf %90, %95 : vector<8x1xf32>
    %c3_18 = arith.constant 3 : index
    %97 = memref.load %arg4[%c3_18] : memref<4xf32, #tpu.memory_space<smem>>
    %98 = vector.broadcast %97 : f32 to vector<1x1xf32>
    %99 = arith.divf %98, %83 : vector<1x1xf32>
    %100 = vector.broadcast %99 : vector<1x1xf32> to vector<8x1xf32>
    %101 = arith.mulf %96, %100 : vector<8x1xf32>
    %102 = vector.broadcast %101 : vector<8x1xf32> to vector<8x1152xf32>
    %103 = vector.broadcast %80 : vector<1x1152xf32> to vector<8x1152xf32>
    %104 = arith.mulf %102, %103 : vector<8x1152xf32>
    %105 = arith.subf %79, %104 : vector<8x1152xf32>
    %c0_19 = arith.constant 0 : index
    %c0_20 = arith.constant 0 : index
    %106 = vector.load %arg5[%c0_19, %c0_20] : memref<1152x128xf32, #tpu.memory_space<vmem>>, vector<1152x128xf32>
    %cst_21 = arith.constant dense<0.000000e+00> : vector<8x128xf32>
    %107 = tpu.matmul %105, %106, %cst_21 {dimension_numbers = #tpu.dot_dimension_numbers<[1], [0], [0], [1], [0, 0, 1, 1], [], []>} : vector<8x1152xf32>, vector<1152x128xf32>, vector<8x128xf32> -> vector<8x128xf32>
    %c0_22 = arith.constant 0 : index
    %c0_23 = arith.constant 0 : index
    %108 = vector.load %arg6[%c0_22, %c0_23] : memref<1x128xf32, #tpu.memory_space<vmem>>, vector<1x128xf32>
    %109 = vector.broadcast %108 : vector<1x128xf32> to vector<8x128xf32>
    %110 = arith.addf %107, %109 : vector<8x128xf32>
    %c0_24 = arith.constant 0 : index
    %c0_25 = arith.constant 0 : index
    %111 = vector.load %arg7[%c0_24, %c0_25] : memref<8x128xf32, #tpu.memory_space<vmem>>, vector<8x128xf32>
    tpu.vector_store %arg7[%c0_24, %c0_25], %110 {strides = array<i32>} : memref<8x128xf32, #tpu.memory_space<vmem>>, vector<8x128xf32>,
    return
  }
  func.func @transform_0(%arg0: i32) -> (i32, i32) {
    %c0_i32 = arith.constant 0 : i32
    %c0_i32_0 = arith.constant 0 : i32
    return %arg0, %c0_i32 : i32, i32
  }
  func.func @transform_1(%arg0: i32) -> (i32, i32) {
    %c0_i32 = arith.constant 0 : i32
    %c0_i32_0 = arith.constant 0 : i32
    %c0_i32_1 = arith.constant 0 : i32
    return %c0_i32, %c0_i32_0 : i32, i32
  }
  func.func @transform_2(%arg0: i32) -> i32 {
    %c0_i32 = arith.constant 0 : i32
    %c0_i32_0 = arith.constant 0 : i32
    return %c0_i32 : i32
  }
  func.func @transform_3(%arg0: i32) -> i32 {
    %c0_i32 = arith.constant 0 : i32
    %c0_i32_0 = arith.constant 0 : i32
    return %c0_i32 : i32
  }
  func.func @transform_4(%arg0: i32) -> (i32, i32) {
    %c0_i32 = arith.constant 0 : i32
    %c0_i32_0 = arith.constant 0 : i32
    %c0_i32_1 = arith.constant 0 : i32
    return %c0_i32, %c0_i32_0 : i32, i32
  }
  func.func @transform_5(%arg0: i32) -> (i32, i32) {
    %c0_i32 = arith.constant 0 : i32
    %c0_i32_0 = arith.constant 0 : i32
    %c0_i32_1 = arith.constant 0 : i32
    return %c0_i32, %c0_i32_0 : i32, i32
  }
  func.func @transform_6(%arg0: i32) -> (i32, i32) {
    %c0_i32 = arith.constant 0 : i32
    %c0_i32_0 = arith.constant 0 : i32
    return %arg0, %c0_i32 : i32, i32
  }
}

</mosaic_0001>

<llo_original>
// kernel: tpu_custom_call.1
$region0: #{tpu_custom_call.1}
  #allocation0 [shape = 'u32[]', space=smem, size = 0x4, offset = 0x4, fixed_abs, tag = 'smem constant byte address 0x4 - core index']
  #allocation1 [shape = 'u32[144,128]{1,0:T(1,128)}', space=vmem, size = 0x12000, scoped, tag = 'internal scratch']
  %s0 = inlined_call_operand.hbm [shape: f32[8,1152], index: 0, kind: input, shape index: {}]
  %s1 = inlined_call_operand.hbm [shape: f32[4,1152], index: 1, kind: input, shape index: {}]
  %s2 = inlined_call_operand.vmem [shape: f32[4], index: 2, kind: input, shape index: {}]
  %s3 = inlined_call_operand.vmem [shape: f32[4], index: 3, kind: input, shape index: {}]
  %s4 = inlined_call_operand.hbm [shape: f32[1152,128], index: 4, kind: input, shape index: {}]
  %s5 = inlined_call_operand.vmem [shape: f32[1,128], index: 5, kind: input, shape index: {}]
  %s6 = inlined_call_operand.hbm [shape: f32[8,128], index: 6, kind: output, shape index: {}]
  %s7 = sld [smem:[#allocation0]]
  $region54: #{tpu_custom_call.1} parent=0
    _
  %s9 = ssub.s32 1, %s7
  %s10 = scalar_select 0, %s9, %s7
  $region1: #{tpu_custom_call.1} parent=0
    #allocation2 [shape = 'u8[36864]{0}', space=vmem, size = 0x9000, scoped, tag = 'input window, operand 0, single buffered']
    #allocation3 [shape = 's32[1]{0}', space=sflag, size = 0x4, scoped, tag = 'scoped memory for tpu_custom_call.1']
    #allocation4 [shape = 's32[1]{0}', space=sflag, size = 0x4, scoped, tag = 'scoped memory for tpu_custom_call.1']
    #allocation5 [shape = 's32[1]{0}', space=sflag, size = 0x4, scoped, tag = 'scoped memory for tpu_custom_call.1']
    #allocation6 [shape = 'u8[18432]{0}', space=vmem, size = 0x4800, scoped, tag = 'input window, operand 1, single buffered']
    #allocation7 [shape = 's32[1]{0}', space=sflag, size = 0x4, scoped, tag = 'scoped memory for tpu_custom_call.1']
    #allocation8 [shape = 'u8[512]{0}', space=smem, size = 0x200, scoped, tag = 'input window, operand 2, single buffered']
    #allocation9 [shape = 'u8[512]{0}', space=smem, size = 0x200, scoped, tag = 'input window, operand 3, single buffered']
    #allocation10 [shape = 's32[1]{0}', space=sflag, size = 0x4, scoped, tag = 'scoped memory for tpu_custom_call.1']
    #allocation11 [shape = 'u8[589824]{0}', space=vmem, size = 0x90000, scoped, tag = 'input window, operand 4, single buffered']
    #allocation12 [shape = 'u8[4096]{0}', space=vmem, size = 0x1000, scoped, tag = 'output window, operand 0, single buffered']
    %11 = vsyncpa [#allocation3], 0
    %12 = vsyncpa [#allocation7], 0
    %13 = vsyncpa [#allocation5], 0
    %14 = vsyncpa [#allocation10], 0
    %15 = vsyncpa [#allocation4], 0
    // Predicated region
    $region2: #{tpu_custom_call.1} parent=1 // pred_check
      _
    $region3: #{tpu_custom_call.1} parent=1 // pred_check_branch
      %17 = sbr.rel (0) target = $region5
    $region4: #{tpu_custom_call.1} parent=1 // pred_region
      %s19 = ssub.s32 1152, 1152
      %20 = vsyncadd [#allocation3], %s19
      %s22 = sshll.u32 [#allocation2], 4
      %s23 = int_to_ptr.vmem [resolvable:$true] %s22
      %25 = dma.hbm_to_vmem [thread:$0]  %s0, 1152, %s23, [#allocation3]
    $region5: #{tpu_custom_call.1} parent=1 // pred_fallthru
      _
    // Predicated region
    $region6: #{tpu_custom_call.1} parent=1 // pred_check
      _
    $region7: #{tpu_custom_call.1} parent=1 // pred_check_branch
      %27 = sbr.rel (0) target = $region9
    $region8: #{tpu_custom_call.1} parent=1 // pred_region
      %s29 = ssub.s32 576, 576
      %30 = vsyncadd [#allocation7], %s29
      %s32 = sshll.u32 [#allocation6], 4
      %s33 = int_to_ptr.vmem [resolvable:$true] %s32
      %35 = dma.hbm_to_vmem [thread:$0]  %s1, 576, %s33, [#allocation7]
    $region9: #{tpu_custom_call.1} parent=1 // pred_fallthru
      _
    // Predicated region
    $region10: #{tpu_custom_call.1} parent=1 // pred_check
      _
    $region11: #{tpu_custom_call.1} parent=1 // pred_check_branch
      %37 = sbr.rel (0) target = $region13
    $region12: #{tpu_custom_call.1} parent=1 // pred_region
      %s39 = ssub.s32 16, 16
      %40 = vsyncadd [#allocation5], %s39
      %s42 = sshll.u32 %s2, 4
      %s43 = int_to_ptr.vmem [resolvable:$true] %s42
      %45 = dma.vmem_to_smem %s43, 16, [#allocation8], [#allocation5]
    $region13: #{tpu_custom_call.1} parent=1 // pred_fallthru
      _
    // Predicated region
    $region14: #{tpu_custom_call.1} parent=1 // pred_check
      _
    $region15: #{tpu_custom_call.1} parent=1 // pred_check_branch
      %47 = sbr.rel (0) target = $region17
    $region16: #{tpu_custom_call.1} parent=1 // pred_region
      %s49 = ssub.s32 16, 16
      %50 = vsyncadd [#allocation10], %s49
      %s52 = sshll.u32 %s3, 4
      %s53 = int_to_ptr.vmem [resolvable:$true] %s52
      %55 = dma.vmem_to_smem %s53, 16, [#allocation9], [#allocation10]
    $region17: #{tpu_custom_call.1} parent=1 // pred_fallthru
      _
    // Predicated region
    $region18: #{tpu_custom_call.1} parent=1 // pred_check
      _
    $region19: #{tpu_custom_call.1} parent=1 // pred_check_branch
      %57 = sbr.rel (0) target = $region21
    $region20: #{tpu_custom_call.1} parent=1 // pred_region
      %s59 = ssub.s32 18432, 18432
      %60 = vsyncadd [#allocation7], %s59
      %s61 = sshll.u32 [#allocation11], 4
      %s62 = int_to_ptr.vmem [resolvable:$true] %s61
      %67 = dma.hbm_to_vmem [thread:$0]  %s4, 18432, %s62, [#allocation7], 128, 128, 8
    $region21: #{tpu_custom_call.1} parent=1 // pred_fallthru
      _
    // Predicated region
    $region22: #{tpu_custom_call.1} parent=1 // pred_check
      _
    $region23: #{tpu_custom_call.1} parent=1 // pred_check_branch
      %69 = sbr.rel (0) target = $region25
    $region24: #{tpu_custom_call.1} parent=1 // pred_region
      _
    $region25: #{tpu_custom_call.1} parent=1 // pred_fallthru
      _
    // Predicated region
    $region26: #{tpu_custom_call.1} parent=1 // pred_check
      _
    $region27: #{tpu_custom_call.1} parent=1 // pred_check_branch
      %71 = sbr.rel (0) target = $region29
    $region28: #{tpu_custom_call.1} parent=1 // pred_region
      %72 = dma.done [#allocation3], 1152
    $region29: #{tpu_custom_call.1} parent=1 // pred_fallthru
      _
    // Predicated region
    $region30: #{tpu_custom_call.1} parent=1 // pred_check
      _
    $region31: #{tpu_custom_call.1} parent=1 // pred_check_branch
      %74 = sbr.rel (0) target = $region33
    $region32: #{tpu_custom_call.1} parent=1 // pred_region
      %75 = dma.done [#allocation7], 576
    $region33: #{tpu_custom_call.1} parent=1 // pred_fallthru
      _
    // Predicated region
    $region34: #{tpu_custom_call.1} parent=1 // pred_check
      _
    $region35: #{tpu_custom_call.1} parent=1 // pred_check_branch
      %77 = sbr.rel (0) target = $region37
    $region36: #{tpu_custom_call.1} parent=1 // pred_region
      %78 = dma.done [#allocation5], 16
    $region37: #{tpu_custom_call.1} parent=1 // pred_fallthru
      _
    // Predicated region
    $region38: #{tpu_custom_call.1} parent=1 // pred_check
      _
    $region39: #{tpu_custom_call.1} parent=1 // pred_check_branch
      %80 = sbr.rel (0) target = $region41
    $region40: #{tpu_custom_call.1} parent=1 // pred_region
      %81 = dma.done [#allocation10], 16
    $region41: #{tpu_custom_call.1} parent=1 // pred_fallthru
      _
    // Predicated region
    $region42: #{tpu_custom_call.1} parent=1 // pred_check
      _
    $region43: #{tpu_custom_call.1} parent=1 // pred_check_branch
      %83 = sbr.rel (0) target = $region45
    $region44: #{tpu_custom_call.1} parent=1 // pred_region
      %84 = dma.done [#allocation7], 18432
    $region45: #{tpu_custom_call.1} parent=1 // pred_fallthru
      _
    %85 = sfence
    %v86 = vld [vmem:[#allocation2] sm:$0xff]
    %v87 = vld [vmem:[#allocation2 + $0x8] sm:$0xff]
    %v88 = vld [vmem:[#allocation2 + $0x10] sm:$0xff]
    %v89 = vld [vmem:[#allocation2 + $0x18] sm:$0xff]
    %v90 = vld [vmem:[#allocation2 + $0x20] sm:$0xff]
    %v91 = vld [vmem:[#allocation2 + $0x28] sm:$0xff]
    %v92 = vld [vmem:[#allocation2 + $0x30] sm:$0xff]
    %v93 = vld [vmem:[#allocation2 + $0x38] sm:$0xff]
    %v94 = vld [vmem:[#allocation2 + $0x40] sm:$0xff]
    %v95 = vld [vmem:[#allocation6] sm:$0xff]
    %v96 = vld [vmem:[#allocation6 + $0x8] sm:$0xff]
    %v97 = vld [vmem:[#allocation6 + $0x10] sm:$0xff]
    %v98 = vld [vmem:[#allocation6 + $0x18] sm:$0xff]
    %v99 = vld [vmem:[#allocation6 + $0x20] sm:$0xf]
    %v100 = vmul.f32 %v95, %v95
    %v101 = vmul.f32 %v96, %v96
    %v102 = vmul.f32 %v97, %v97
    %v103 = vmul.f32 %v98, %v98
    %v104 = vmul.f32 %v99, %v99
    %v110 = vlaneseq
    %v111 = vshrl.u32 %v110, 7
    %v112 = vsub.s32 0, %v111
    %v113 = vrot.slane %v100, %v112
    %v114 = vlaneseq
    %v115 = vshrl.u32 %v114, 7
    %v116 = vsub.s32 4, %v115
    %v117 = vrot.slane %v100, %v116
    %v118 = vlaneseq
    %v119 = vshrl.u32 %v118, 7
    %v120 = vsub.s32 0, %v119
    %v121 = vrot.slane %v101, %v120
    %v122 = vlaneseq
    %v123 = vshrl.u32 %v122, 7
    %v124 = vsub.s32 4, %v123
    %v125 = vrot.slane %v101, %v124
    %v126 = vlaneseq
    %v127 = vshrl.u32 %v126, 7
    %v128 = vsub.s32 0, %v127
    %v129 = vrot.slane %v102, %v128
    %v130 = vlaneseq
    %v131 = vshrl.u32 %v130, 7
    %v132 = vsub.s32 4, %v131
    %v133 = vrot.slane %v102, %v132
    %v134 = vlaneseq
    %v135 = vshrl.u32 %v134, 7
    %v136 = vsub.s32 0, %v135
    %v137 = vrot.slane %v103, %v136
    %v138 = vlaneseq
    %v139 = vshrl.u32 %v138, 7
    %v140 = vsub.s32 4, %v139
    %v141 = vrot.slane %v103, %v140
    %v142 = vlaneseq
    %v143 = vshrl.u32 %v142, 7
    %v144 = vsub.s32 0, %v143
    %v145 = vrot.slane %v104, %v144
    %vm155 = vcmask 1040384
    %v156 = vsel %vm155, %v113, 0.0
    %v157 = vsel %vm155, %v117, 0.0
    %v158 = vadd.f32 %v156, %v157
    %v159 = vsel %vm155, %v121, 0.0
    %v160 = vadd.f32 %v158, %v159
    %v161 = vsel %vm155, %v125, 0.0
    %v162 = vadd.f32 %v160, %v161
    %v163 = vsel %vm155, %v129, 0.0
    %v164 = vadd.f32 %v162, %v163
    %v165 = vsel %vm155, %v133, 0.0
    %v166 = vadd.f32 %v164, %v165
    %v167 = vsel %vm155, %v137, 0.0
    %v168 = vadd.f32 %v166, %v167
    %v169 = vsel %vm155, %v141, 0.0
    %v170 = vadd.f32 %v168, %v169
    %v171 = vsel %vm155, %v145, 0.0
    %v172 = vadd.f32 %v170, %v171
    %173 = vadd.xlane.f32.xlu0 %v172
    %v174 = vpop.xlane.xlu0 %173
    %v180 = vlaneseq
    %v181 = vshrl.u32 %v180, 7
    %v182 = vsub.s32 0, %v181
    %v183 = vrot.slane %v95, %v182
    %v184 = vlaneseq
    %v185 = vshrl.u32 %v184, 7
    %v186 = vsub.s32 4, %v185
    %v187 = vrot.slane %v95, %v186
    %v188 = vlaneseq
    %v189 = vshrl.u32 %v188, 7
    %v190 = vsub.s32 0, %v189
    %v191 = vrot.slane %v96, %v190
    %v192 = vlaneseq
    %v193 = vshrl.u32 %v192, 7
    %v194 = vsub.s32 4, %v193
    %v195 = vrot.slane %v96, %v194
    %v196 = vlaneseq
    %v197 = vshrl.u32 %v196, 7
    %v198 = vsub.s32 0, %v197
    %v199 = vrot.slane %v97, %v198
    %v200 = vlaneseq
    %v201 = vshrl.u32 %v200, 7
    %v202 = vsub.s32 4, %v201
    %v203 = vrot.slane %v97, %v202
    %v204 = vlaneseq
    %v205 = vshrl.u32 %v204, 7
    %v206 = vsub.s32 0, %v205
    %v207 = vrot.slane %v98, %v206
    %v208 = vlaneseq
    %v209 = vshrl.u32 %v208, 7
    %v210 = vsub.s32 4, %v209
    %v211 = vrot.slane %v98, %v210
    %v212 = vlaneseq
    %v213 = vshrl.u32 %v212, 7
    %v214 = vsub.s32 0, %v213
    %v215 = vrot.slane %v99, %v214
    %v225 = vlaneseq
    %v226 = vshrl.u32 %v225, 7
    %v227 = vsub.s32 0, %v226
    %v228 = vrot.slane %v183, %v227
    %v229 = vlaneseq
    %v230 = vshrl.u32 %v229, 7
    %v231 = vsub.s32 0, %v230
    %v232 = vrot.slane %v187, %v231
    %v233 = vlaneseq
    %v234 = vshrl.u32 %v233, 7
    %v235 = vsub.s32 0, %v234
    %v236 = vrot.slane %v191, %v235
    %v237 = vlaneseq
    %v238 = vshrl.u32 %v237, 7
    %v239 = vsub.s32 0, %v238
    %v240 = vrot.slane %v195, %v239
    %v241 = vlaneseq
    %v242 = vshrl.u32 %v241, 7
    %v243 = vsub.s32 0, %v242
    %v244 = vrot.slane %v199, %v243
    %v245 = vlaneseq
    %v246 = vshrl.u32 %v245, 7
    %v247 = vsub.s32 0, %v246
    %v248 = vrot.slane %v203, %v247
    %v249 = vlaneseq
    %v250 = vshrl.u32 %v249, 7
    %v251 = vsub.s32 0, %v250
    %v252 = vrot.slane %v207, %v251
    %v253 = vlaneseq
    %v254 = vshrl.u32 %v253, 7
    %v255 = vsub.s32 0, %v254
    %v256 = vrot.slane %v211, %v255
    %v257 = vlaneseq
    %v258 = vshrl.u32 %v257, 7
    %v259 = vsub.s32 0, %v258
    %v260 = vrot.slane %v215, %v259
    %v261 = vmul.f32 %v86, %v228
    %v262 = vmul.f32 %v87, %v232
    %v263 = vmul.f32 %v88, %v236
    %v264 = vmul.f32 %v89, %v240
    %v265 = vmul.f32 %v90, %v244
    %v266 = vmul.f32 %v91, %v248
    %v267 = vmul.f32 %v92, %v252
    %v268 = vmul.f32 %v93, %v256
    %v269 = vmul.f32 %v94, %v260
    %v270 = vadd.f32 %v261, %v262
    %v271 = vadd.f32 %v270, %v263
    %v272 = vadd.f32 %v271, %v264
    %v273 = vadd.f32 %v272, %v265
    %v274 = vadd.f32 %v273, %v266
    %v275 = vadd.f32 %v274, %v267
    %v276 = vadd.f32 %v275, %v268
    %v277 = vadd.f32 %v276, %v269
    %278 = vadd.xlane.f32.xlu0 %v277
    %v279 = vpop.xlane.xlu0 %278
    %s280 = sld [smem:[#allocation8]]
    %v281 = vstv %s280
    %v282 = vadd.f32 %v279, %v281
    %v283 = vxor.u32 %v282, 2147483648
    %v284 = vmul.f32 %v283, 1.442695
    %v285 = vpow.pop %v284
    %v286 = vadd.f32 %v285, 1.0
    %v287 = vrcp.pop %v286
    %v288 = vmul.f32 1.0, %v287
    %v289 = vmul.f32 %v282, %v288
    %s290 = sld [smem:[#allocation9]]
    %v291 = vstv %s290
    %v292 = vrcp.pop %v174
    %v293 = vmul.f32 %v291, %v292
    %v294 = vlaneseq
    %v295 = vshrl.u32 %v294, 7
    %v296 = vsub.s32 0, %v295
    %v297 = vrot.slane %v293, %v296
    %v298 = vmul.f32 %v289, %v297
    %v299 = vmul.f32 %v298, %v228
    %v300 = vmul.f32 %v298, %v232
    %v301 = vmul.f32 %v298, %v236
    %v302 = vmul.f32 %v298, %v240
    %v303 = vmul.f32 %v298, %v244
    %v304 = vmul.f32 %v298, %v248
    %v305 = vmul.f32 %v298, %v252
    %v306 = vmul.f32 %v298, %v256
    %v307 = vmul.f32 %v298, %v260
    %v308 = vsub.f32 %v86, %v299
    %v309 = vsub.f32 %v87, %v300
    %v310 = vsub.f32 %v88, %v301
    %v311 = vsub.f32 %v89, %v302
    %v312 = vsub.f32 %v90, %v303
    %v313 = vsub.f32 %v91, %v304
    %v314 = vsub.f32 %v92, %v305
    %v315 = vsub.f32 %v93, %v306
    %v316 = vsub.f32 %v94, %v307
    %v317 = vlaneseq
    %v318 = vshrl.u32 %v317, 7
    %v319 = vsub.s32 1, %v318
    %v320 = vrot.slane %v100, %v319
    %v321 = vlaneseq
    %v322 = vshrl.u32 %v321, 7
    %v323 = vsub.s32 5, %v322
    %v324 = vrot.slane %v100, %v323
    %v325 = vlaneseq
    %v326 = vshrl.u32 %v325, 7
    %v327 = vsub.s32 1, %v326
    %v328 = vrot.slane %v101, %v327
    %v329 = vlaneseq
    %v330 = vshrl.u32 %v329, 7
    %v331 = vsub.s32 5, %v330
    %v332 = vrot.slane %v101, %v331
    %v333 = vlaneseq
    %v334 = vshrl.u32 %v333, 7
    %v335 = vsub.s32 1, %v334
    %v336 = vrot.slane %v102, %v335
    %v337 = vlaneseq
    %v338 = vshrl.u32 %v337, 7
    %v339 = vsub.s32 5, %v338
    %v340 = vrot.slane %v102, %v339
    %v341 = vlaneseq
    %v342 = vshrl.u32 %v341, 7
    %v343 = vsub.s32 1, %v342
    %v344 = vrot.slane %v103, %v343
    %v345 = vlaneseq
    %v346 = vshrl.u32 %v345, 7
    %v347 = vsub.s32 5, %v346
    %v348 = vrot.slane %v103, %v347
    %v349 = vlaneseq
    %v350 = vshrl.u32 %v349, 7
    %v351 = vsub.s32 1, %v350
    %v352 = vrot.slane %v104, %v351
    %vm362 = vcmask 1041409
    %v363 = vsel %vm362, %v320, 0.0
    %v364 = vsel %vm362, %v324, 0.0
    %v365 = vadd.f32 %v363, %v364
    %v366 = vsel %vm362, %v328, 0.0
    %v367 = vadd.f32 %v365, %v366
    %v368 = vsel %vm362, %v332, 0.0
    %v369 = vadd.f32 %v367, %v368
    %v370 = vsel %vm362, %v336, 0.0
    %v371 = vadd.f32 %v369, %v370
    %v372 = vsel %vm362, %v340, 0.0
    %v373 = vadd.f32 %v371, %v372
    %v374 = vsel %vm362, %v344, 0.0
    %v375 = vadd.f32 %v373, %v374
    %v376 = vsel %vm362, %v348, 0.0
    %v377 = vadd.f32 %v375, %v376
    %v378 = vsel %vm362, %v352, 0.0
    %v379 = vadd.f32 %v377, %v378
    %380 = vadd.xlane.f32.xlu0 %v379
    %v381 = vpop.xlane.xlu0 %380
    %v382 = vlaneseq
    %v383 = vshrl.u32 %v382, 7
    %v384 = vsub.s32 1, %v383
    %v385 = vrot.slane %v95, %v384
    %v386 = vlaneseq
    %v387 = vshrl.u32 %v386, 7
    %v388 = vsub.s32 5, %v387
    %v389 = vrot.slane %v95, %v388
    %v390 = vlaneseq
    %v391 = vshrl.u32 %v390, 7
    %v392 = vsub.s32 1, %v391
    %v393 = vrot.slane %v96, %v392
    %v394 = vlaneseq
    %v395 = vshrl.u32 %v394, 7
    %v396 = vsub.s32 5, %v395
    %v397 = vrot.slane %v96, %v396
    %v398 = vlaneseq
    %v399 = vshrl.u32 %v398, 7
    %v400 = vsub.s32 1, %v399
    %v401 = vrot.slane %v97, %v400
    %v402 = vlaneseq
    %v403 = vshrl.u32 %v402, 7
    %v404 = vsub.s32 5, %v403
    %v405 = vrot.slane %v97, %v404
    %v406 = vlaneseq
    %v407 = vshrl.u32 %v406, 7
    %v408 = vsub.s32 1, %v407
    %v409 = vrot.slane %v98, %v408
    %v410 = vlaneseq
    %v411 = vshrl.u32 %v410, 7
    %v412 = vsub.s32 5, %v411
    %v413 = vrot.slane %v98, %v412
    %v414 = vlaneseq
    %v415 = vshrl.u32 %v414, 7
    %v416 = vsub.s32 1, %v415
    %v417 = vrot.slane %v99, %v416
    %v427 = vlaneseq
    %v428 = vshrl.u32 %v427, 7
    %v429 = vsub.s32 1, %v428
    %v430 = vrot.slane %v385, %v429
    %v431 = vlaneseq
    %v432 = vshrl.u32 %v431, 7
    %v433 = vsub.s32 1, %v432
    %v434 = vrot.slane %v389, %v433
    %v435 = vlaneseq
    %v436 = vshrl.u32 %v435, 7
    %v437 = vsub.s32 1, %v436
    %v438 = vrot.slane %v393, %v437
    %v439 = vlaneseq
    %v440 = vshrl.u32 %v439, 7
    %v441 = vsub.s32 1, %v440
    %v442 = vrot.slane %v397, %v441
    %v443 = vlaneseq
    %v444 = vshrl.u32 %v443, 7
    %v445 = vsub.s32 1, %v444
    %v446 = vrot.slane %v401, %v445
    %v447 = vlaneseq
    %v448 = vshrl.u32 %v447, 7
    %v449 = vsub.s32 1, %v448
    %v450 = vrot.slane %v405, %v449
    %v451 = vlaneseq
    %v452 = vshrl.u32 %v451, 7
    %v453 = vsub.s32 1, %v452
    %v454 = vrot.slane %v409, %v453
    %v455 = vlaneseq
    %v456 = vshrl.u32 %v455, 7
    %v457 = vsub.s32 1, %v456
    %v458 = vrot.slane %v413, %v457
    %v459 = vlaneseq
    %v460 = vshrl.u32 %v459, 7
    %v461 = vsub.s32 1, %v460
    %v462 = vrot.slane %v417, %v461
    %v463 = vmul.f32 %v308, %v430
    %v464 = vmul.f32 %v309, %v434
    %v465 = vmul.f32 %v310, %v438
    %v466 = vmul.f32 %v311, %v442
    %v467 = vmul.f32 %v312, %v446
    %v468 = vmul.f32 %v313, %v450
    %v469 = vmul.f32 %v314, %v454
    %v470 = vmul.f32 %v315, %v458
    %v471 = vmul.f32 %v316, %v462
    %v472 = vadd.f32 %v463, %v464
    %v473 = vadd.f32 %v472, %v465
    %v474 = vadd.f32 %v473, %v466
    %v475 = vadd.f32 %v474, %v467
    %v476 = vadd.f32 %v475, %v468
    %v477 = vadd.f32 %v476, %v469
    %v478 = vadd.f32 %v477, %v470
    %v479 = vadd.f32 %v478, %v471
    %480 = vadd.xlane.f32.xlu0 %v479
    %v481 = vpop.xlane.xlu0 %480
    %s482 = sld [smem:[#allocation8 + $0x1]]
    %v483 = vstv %s482
    %v484 = vadd.f32 %v481, %v483
    %v485 = vxor.u32 %v484, 2147483648
    %v486 = vmul.f32 %v485, 1.442695
    %v487 = vpow.pop %v486
    %v488 = vadd.f32 %v487, 1.0
    %v489 = vrcp.pop %v488
    %v490 = vmul.f32 1.0, %v489
    %v491 = vmul.f32 %v484, %v490
    %s492 = sld [smem:[#allocation9 + $0x1]]
    %v493 = vstv %s492
    %v494 = vrcp.pop %v381
    %v495 = vmul.f32 %v493, %v494
    %v496 = vlaneseq
    %v497 = vshrl.u32 %v496, 7
    %v498 = vsub.s32 1, %v497
    %v499 = vrot.slane %v495, %v498
    %v500 = vmul.f32 %v491, %v499
    %v501 = vmul.f32 %v500, %v430
    %v502 = vmul.f32 %v500, %v434
    %v503 = vmul.f32 %v500, %v438
    %v504 = vmul.f32 %v500, %v442
    %v505 = vmul.f32 %v500, %v446
    %v506 = vmul.f32 %v500, %v450
    %v507 = vmul.f32 %v500, %v454
    %v508 = vmul.f32 %v500, %v458
    %v509 = vmul.f32 %v500, %v462
    %v510 = vsub.f32 %v308, %v501
    %v511 = vsub.f32 %v309, %v502
    %v512 = vsub.f32 %v310, %v503
    %v513 = vsub.f32 %v311, %v504
    %v514 = vsub.f32 %v312, %v505
    %v515 = vsub.f32 %v313, %v506
    %v516 = vsub.f32 %v314, %v507
    %v517 = vsub.f32 %v315, %v508
    %v518 = vsub.f32 %v316, %v509
    %v519 = vlaneseq
    %v520 = vshrl.u32 %v519, 7
    %v521 = vsub.s32 2, %v520
    %v522 = vrot.slane %v100, %v521
    %v523 = vlaneseq
    %v524 = vshrl.u32 %v523, 7
    %v525 = vsub.s32 6, %v524
    %v526 = vrot.slane %v100, %v525
    %v527 = vlaneseq
    %v528 = vshrl.u32 %v527, 7
    %v529 = vsub.s32 2, %v528
    %v530 = vrot.slane %v101, %v529
    %v531 = vlaneseq
    %v532 = vshrl.u32 %v531, 7
    %v533 = vsub.s32 6, %v532
    %v534 = vrot.slane %v101, %v533
    %v535 = vlaneseq
    %v536 = vshrl.u32 %v535, 7
    %v537 = vsub.s32 2, %v536
    %v538 = vrot.slane %v102, %v537
    %v539 = vlaneseq
    %v540 = vshrl.u32 %v539, 7
    %v541 = vsub.s32 6, %v540
    %v542 = vrot.slane %v102, %v541
    %v543 = vlaneseq
    %v544 = vshrl.u32 %v543, 7
    %v545 = vsub.s32 2, %v544
    %v546 = vrot.slane %v103, %v545
    %v547 = vlaneseq
    %v548 = vshrl.u32 %v547, 7
    %v549 = vsub.s32 6, %v548
    %v550 = vrot.slane %v103, %v549
    %v551 = vlaneseq
    %v552 = vshrl.u32 %v551, 7
    %v553 = vsub.s32 2, %v552
    %v554 = vrot.slane %v104, %v553
    %vm564 = vcmask 1042434
    %v565 = vsel %vm564, %v522, 0.0
    %v566 = vsel %vm564, %v526, 0.0
    %v567 = vadd.f32 %v565, %v566
    %v568 = vsel %vm564, %v530, 0.0
    %v569 = vadd.f32 %v567, %v568
    %v570 = vsel %vm564, %v534, 0.0
    %v571 = vadd.f32 %v569, %v570
    %v572 = vsel %vm564, %v538, 0.0
    %v573 = vadd.f32 %v571, %v572
    %v574 = vsel %vm564, %v542, 0.0
    %v575 = vadd.f32 %v573, %v574
    %v576 = vsel %vm564, %v546, 0.0
    %v577 = vadd.f32 %v575, %v576
    %v578 = vsel %vm564, %v550, 0.0
    %v579 = vadd.f32 %v577, %v578
    %v580 = vsel %vm564, %v554, 0.0
    %v581 = vadd.f32 %v579, %v580
    %582 = vadd.xlane.f32.xlu0 %v581
    %v583 = vpop.xlane.xlu0 %582
    %v584 = vlaneseq
    %v585 = vshrl.u32 %v584, 7
    %v586 = vsub.s32 2, %v585
    %v587 = vrot.slane %v95, %v586
    %v588 = vlaneseq
    %v589 = vshrl.u32 %v588, 7
    %v590 = vsub.s32 6, %v589
    %v591 = vrot.slane %v95, %v590
    %v592 = vlaneseq
    %v593 = vshrl.u32 %v592, 7
    %v594 = vsub.s32 2, %v593
    %v595 = vrot.slane %v96, %v594
    %v596 = vlaneseq
    %v597 = vshrl.u32 %v596, 7
    %v598 = vsub.s32 6, %v597
    %v599 = vrot.slane %v96, %v598
    %v600 = vlaneseq
    %v601 = vshrl.u32 %v600, 7
    %v602 = vsub.s32 2, %v601
    %v603 = vrot.slane %v97, %v602
    %v604 = vlaneseq
    %v605 = vshrl.u32 %v604, 7
    %v606 = vsub.s32 6, %v605
    %v607 = vrot.slane %v97, %v606
    %v608 = vlaneseq
    %v609 = vshrl.u32 %v608, 7
    %v610 = vsub.s32 2, %v609
    %v611 = vrot.slane %v98, %v610
    %v612 = vlaneseq
    %v613 = vshrl.u32 %v612, 7
    %v614 = vsub.s32 6, %v613
    %v615 = vrot.slane %v98, %v614
    %v616 = vlaneseq
    %v617 = vshrl.u32 %v616, 7
    %v618 = vsub.s32 2, %v617
    %v619 = vrot.slane %v99, %v618
    %v629 = vlaneseq
    %v630 = vshrl.u32 %v629, 7
    %v631 = vsub.s32 2, %v630
    %v632 = vrot.slane %v587, %v631
    %v633 = vlaneseq
    %v634 = vshrl.u32 %v633, 7
    %v635 = vsub.s32 2, %v634
    %v636 = vrot.slane %v591, %v635
    %v637 = vlaneseq
    %v638 = vshrl.u32 %v637, 7
    %v639 = vsub.s32 2, %v638
    %v640 = vrot.slane %v595, %v639
    %v641 = vlaneseq
    %v642 = vshrl.u32 %v641, 7
    %v643 = vsub.s32 2, %v642
    %v644 = vrot.slane %v599, %v643
    %v645 = vlaneseq
    %v646 = vshrl.u32 %v645, 7
    %v647 = vsub.s32 2, %v646
    %v648 = vrot.slane %v603, %v647
    %v649 = vlaneseq
    %v650 = vshrl.u32 %v649, 7
    %v651 = vsub.s32 2, %v650
    %v652 = vrot.slane %v607, %v651
    %v653 = vlaneseq
    %v654 = vshrl.u32 %v653, 7
    %v655 = vsub.s32 2, %v654
    %v656 = vrot.slane %v611, %v655
    %v657 = vlaneseq
    %v658 = vshrl.u32 %v657, 7
    %v659 = vsub.s32 2, %v658
    %v660 = vrot.slane %v615, %v659
    %v661 = vlaneseq
    %v662 = vshrl.u32 %v661, 7
    %v663 = vsub.s32 2, %v662
    %v664 = vrot.slane %v619, %v663
    %v665 = vmul.f32 %v510, %v632
    %v666 = vmul.f32 %v511, %v636
    %v667 = vmul.f32 %v512, %v640
    %v668 = vmul.f32 %v513, %v644
    %v669 = vmul.f32 %v514, %v648
    %v670 = vmul.f32 %v515, %v652
    %v671 = vmul.f32 %v516, %v656
    %v672 = vmul.f32 %v517, %v660
    %v673 = vmul.f32 %v518, %v664
    %v674 = vadd.f32 %v665, %v666
    %v675 = vadd.f32 %v674, %v667
    %v676 = vadd.f32 %v675, %v668
    %v677 = vadd.f32 %v676, %v669
    %v678 = vadd.f32 %v677, %v670
    %v679 = vadd.f32 %v678, %v671
    %v680 = vadd.f32 %v679, %v672
    %v681 = vadd.f32 %v680, %v673
    %682 = vadd.xlane.f32.xlu0 %v681
    %v683 = vpop.xlane.xlu0 %682
    %s684 = sld [smem:[#allocation8 + $0x2]]
    %v685 = vstv %s684
    %v686 = vadd.f32 %v683, %v685
    %v687 = vxor.u32 %v686, 2147483648
    %v688 = vmul.f32 %v687, 1.442695
    %v689 = vpow.pop %v688
    %v690 = vadd.f32 %v689, 1.0
    %v691 = vrcp.pop %v690
    %v692 = vmul.f32 1.0, %v691
    %v693 = vmul.f32 %v686, %v692
    %s694 = sld [smem:[#allocation9 + $0x2]]
    %v695 = vstv %s694
    %v696 = vrcp.pop %v583
    %v697 = vmul.f32 %v695, %v696
    %v698 = vlaneseq
    %v699 = vshrl.u32 %v698, 7
    %v700 = vsub.s32 2, %v699
    %v701 = vrot.slane %v697, %v700
    %v702 = vmul.f32 %v693, %v701
    %v703 = vmul.f32 %v702, %v632
    %v704 = vmul.f32 %v702, %v636
    %v705 = vmul.f32 %v702, %v640
    %v706 = vmul.f32 %v702, %v644
    %v707 = vmul.f32 %v702, %v648
    %v708 = vmul.f32 %v702, %v652
    %v709 = vmul.f32 %v702, %v656
    %v710 = vmul.f32 %v702, %v660
    %v711 = vmul.f32 %v702, %v664
    %v712 = vsub.f32 %v510, %v703
    %v713 = vsub.f32 %v511, %v704
    %v714 = vsub.f32 %v512, %v705
    %v715 = vsub.f32 %v513, %v706
    %v716 = vsub.f32 %v514, %v707
    %v717 = vsub.f32 %v515, %v708
    %v718 = vsub.f32 %v516, %v709
    %v719 = vsub.f32 %v517, %v710
    %v720 = vsub.f32 %v518, %v711
    %v721 = vlaneseq
    %v722 = vshrl.u32 %v721, 7
    %v723 = vsub.s32 3, %v722
    %v724 = vrot.slane %v100, %v723
    %v725 = vlaneseq
    %v726 = vshrl.u32 %v725, 7
    %v727 = vsub.s32 7, %v726
    %v728 = vrot.slane %v100, %v727
    %v729 = vlaneseq
    %v730 = vshrl.u32 %v729, 7
    %v731 = vsub.s32 3, %v730
    %v732 = vrot.slane %v101, %v731
    %v733 = vlaneseq
    %v734 = vshrl.u32 %v733, 7
    %v735 = vsub.s32 7, %v734
    %v736 = vrot.slane %v101, %v735
    %v737 = vlaneseq
    %v738 = vshrl.u32 %v737, 7
    %v739 = vsub.s32 3, %v738
    %v740 = vrot.slane %v102, %v739
    %v741 = vlaneseq
    %v742 = vshrl.u32 %v741, 7
    %v743 = vsub.s32 7, %v742
    %v744 = vrot.slane %v102, %v743
    %v745 = vlaneseq
    %v746 = vshrl.u32 %v745, 7
    %v747 = vsub.s32 3, %v746
    %v748 = vrot.slane %v103, %v747
    %v749 = vlaneseq
    %v750 = vshrl.u32 %v749, 7
    %v751 = vsub.s32 7, %v750
    %v752 = vrot.slane %v103, %v751
    %v753 = vlaneseq
    %v754 = vshrl.u32 %v753, 7
    %v755 = vsub.s32 3, %v754
    %v756 = vrot.slane %v104, %v755
    %vm766 = vcmask 1043459
    %v767 = vsel %vm766, %v724, 0.0
    %v768 = vsel %vm766, %v728, 0.0
    %v769 = vadd.f32 %v767, %v768
    %v770 = vsel %vm766, %v732, 0.0
    %v771 = vadd.f32 %v769, %v770
    %v772 = vsel %vm766, %v736, 0.0
    %v773 = vadd.f32 %v771, %v772
    %v774 = vsel %vm766, %v740, 0.0
    %v775 = vadd.f32 %v773, %v774
    %v776 = vsel %vm766, %v744, 0.0
    %v777 = vadd.f32 %v775, %v776
    %v778 = vsel %vm766, %v748, 0.0
    %v779 = vadd.f32 %v777, %v778
    %v780 = vsel %vm766, %v752, 0.0
    %v781 = vadd.f32 %v779, %v780
    %v782 = vsel %vm766, %v756, 0.0
    %v783 = vadd.f32 %v781, %v782
    %784 = vadd.xlane.f32.xlu0 %v783
    %v785 = vpop.xlane.xlu0 %784
    %v786 = vlaneseq
    %v787 = vshrl.u32 %v786, 7
    %v788 = vsub.s32 3, %v787
    %v789 = vrot.slane %v95, %v788
    %v790 = vlaneseq
    %v791 = vshrl.u32 %v790, 7
    %v792 = vsub.s32 7, %v791
    %v793 = vrot.slane %v95, %v792
    %v794 = vlaneseq
    %v795 = vshrl.u32 %v794, 7
    %v796 = vsub.s32 3, %v795
    %v797 = vrot.slane %v96, %v796
    %v798 = vlaneseq
    %v799 = vshrl.u32 %v798, 7
    %v800 = vsub.s32 7, %v799
    %v801 = vrot.slane %v96, %v800
    %v802 = vlaneseq
    %v803 = vshrl.u32 %v802, 7
    %v804 = vsub.s32 3, %v803
    %v805 = vrot.slane %v97, %v804
    %v806 = vlaneseq
    %v807 = vshrl.u32 %v806, 7
    %v808 = vsub.s32 7, %v807
    %v809 = vrot.slane %v97, %v808
    %v810 = vlaneseq
    %v811 = vshrl.u32 %v810, 7
    %v812 = vsub.s32 3, %v811
    %v813 = vrot.slane %v98, %v812
    %v814 = vlaneseq
    %v815 = vshrl.u32 %v814, 7
    %v816 = vsub.s32 7, %v815
    %v817 = vrot.slane %v98, %v816
    %v818 = vlaneseq
    %v819 = vshrl.u32 %v818, 7
    %v820 = vsub.s32 3, %v819
    %v821 = vrot.slane %v99, %v820
    %v831 = vlaneseq
    %v832 = vshrl.u32 %v831, 7
    %v833 = vsub.s32 3, %v832
    %v834 = vrot.slane %v789, %v833
    %v835 = vlaneseq
    %v836 = vshrl.u32 %v835, 7
    %v837 = vsub.s32 3, %v836
    %v838 = vrot.slane %v793, %v837
    %v839 = vlaneseq
    %v840 = vshrl.u32 %v839, 7
    %v841 = vsub.s32 3, %v840
    %v842 = vrot.slane %v797, %v841
    %v843 = vlaneseq
    %v844 = vshrl.u32 %v843, 7
    %v845 = vsub.s32 3, %v844
    %v846 = vrot.slane %v801, %v845
    %v847 = vlaneseq
    %v848 = vshrl.u32 %v847, 7
    %v849 = vsub.s32 3, %v848
    %v850 = vrot.slane %v805, %v849
    %v851 = vlaneseq
    %v852 = vshrl.u32 %v851, 7
    %v853 = vsub.s32 3, %v852
    %v854 = vrot.slane %v809, %v853
    %v855 = vlaneseq
    %v856 = vshrl.u32 %v855, 7
    %v857 = vsub.s32 3, %v856
    %v858 = vrot.slane %v813, %v857
    %v859 = vlaneseq
    %v860 = vshrl.u32 %v859, 7
    %v861 = vsub.s32 3, %v860
    %v862 = vrot.slane %v817, %v861
    %v863 = vlaneseq
    %v864 = vshrl.u32 %v863, 7
    %v865 = vsub.s32 3, %v864
    %v866 = vrot.slane %v821, %v865
    %v867 = vmul.f32 %v712, %v834
    %v868 = vmul.f32 %v713, %v838
    %v869 = vmul.f32 %v714, %v842
    %v870 = vmul.f32 %v715, %v846
    %v871 = vmul.f32 %v716, %v850
    %v872 = vmul.f32 %v717, %v854
    %v873 = vmul.f32 %v718, %v858
    %v874 = vmul.f32 %v719, %v862
    %v875 = vmul.f32 %v720, %v866
    %v876 = vadd.f32 %v867, %v868
    %v877 = vadd.f32 %v876, %v869
    %v878 = vadd.f32 %v877, %v870
    %v879 = vadd.f32 %v878, %v871
    %v880 = vadd.f32 %v879, %v872
    %v881 = vadd.f32 %v880, %v873
    %v882 = vadd.f32 %v881, %v874
    %v883 = vadd.f32 %v882, %v875
    %884 = vadd.xlane.f32.xlu0 %v883
    %v885 = vpop.xlane.xlu0 %884
    %s886 = sld [smem:[#allocation8 + $0x3]]
    %v887 = vstv %s886
    %v888 = vadd.f32 %v885, %v887
    %v889 = vxor.u32 %v888, 2147483648
    %v890 = vmul.f32 %v889, 1.442695
    %v891 = vpow.pop %v890
    %v892 = vadd.f32 %v891, 1.0
    %v893 = vrcp.pop %v892
    %v894 = vmul.f32 1.0, %v893
    %v895 = vmul.f32 %v888, %v894
    %s896 = sld [smem:[#allocation9 + $0x3]]
    %v897 = vstv %s896
    %v898 = vrcp.pop %v785
    %v899 = vmul.f32 %v897, %v898
    %v900 = vlaneseq
    %v901 = vshrl.u32 %v900, 7
    %v902 = vsub.s32 3, %v901
    %v903 = vrot.slane %v899, %v902
    %v904 = vmul.f32 %v895, %v903
    %v905 = vmul.f32 %v904, %v834
    %v906 = vmul.f32 %v904, %v838
    %v907 = vmul.f32 %v904, %v842
    %v908 = vmul.f32 %v904, %v846
    %v909 = vmul.f32 %v904, %v850
    %v910 = vmul.f32 %v904, %v854
    %v911 = vmul.f32 %v904, %v858
    %v912 = vmul.f32 %v904, %v862
    %v913 = vmul.f32 %v904, %v866
    %v914 = vsub.f32 %v712, %v905
    %v915 = vsub.f32 %v713, %v906
    %v916 = vsub.f32 %v714, %v907
    %v917 = vsub.f32 %v715, %v908
    %v918 = vsub.f32 %v716, %v909
    %v919 = vsub.f32 %v717, %v910
    %v920 = vsub.f32 %v718, %v911
    %v921 = vsub.f32 %v719, %v912
    %v922 = vsub.f32 %v720, %v913
    %v923 = vld [vmem:[#allocation11] sm:$0xff]
    %v924 = vld [vmem:[#allocation11 + $0x8] sm:$0xff]
    %v925 = vld [vmem:[#allocation11 + $0x10] sm:$0xff]
    %v926 = vld [vmem:[#allocation11 + $0x18] sm:$0xff]
    %v927 = vld [vmem:[#allocation11 + $0x20] sm:$0xff]
    %v928 = vld [vmem:[#allocation11 + $0x28] sm:$0xff]
    %v929 = vld [vmem:[#allocation11 + $0x30] sm:$0xff]
    %v930 = vld [vmem:[#allocation11 + $0x38] sm:$0xff]
    %v931 = vld [vmem:[#allocation11 + $0x40] sm:$0xff]
    %v932 = vld [vmem:[#allocation11 + $0x48] sm:$0xff]
    %v933 = vld [vmem:[#allocation11 + $0x50] sm:$0xff]
    %v934 = vld [vmem:[#allocation11 + $0x58] sm:$0xff]
    %v935 = vld [vmem:[#allocation11 + $0x60] sm:$0xff]
    %v936 = vld [vmem:[#allocation11 + $0x68] sm:$0xff]
    %v937 = vld [vmem:[#allocation11 + $0x70] sm:$0xff]
    %v938 = vld [vmem:[#allocation11 + $0x78] sm:$0xff]
    %v939 = vld [vmem:[#allocation11 + $0x80] sm:$0xff]
    %v940 = vld [vmem:[#allocation11 + $0x88] sm:$0xff]
    %v941 = vld [vmem:[#allocation11 + $0x90] sm:$0xff]
    %v942 = vld [vmem:[#allocation11 + $0x98] sm:$0xff]
    %v943 = vld [vmem:[#allocation11 + $0xa0] sm:$0xff]
    %v944 = vld [vmem:[#allocation11 + $0xa8] sm:$0xff]
    %v945 = vld [vmem:[#allocation11 + $0xb0] sm:$0xff]
    %v946 = vld [vmem:[#allocation11 + $0xb8] sm:$0xff]
    %v947 = vld [vmem:[#allocation11 + $0xc0] sm:$0xff]
    %v948 = vld [vmem:[#allocation11 + $0xc8] sm:$0xff]
    %v949 = vld [vmem:[#allocation11 + $0xd0] sm:$0xff]
    %v950 = vld [vmem:[#allocation11 + $0xd8] sm:$0xff]
    %v951 = vld [vmem:[#allocation11 + $0xe0] sm:$0xff]
    %v952 = vld [vmem:[#allocation11 + $0xe8] sm:$0xff]
    %v953 = vld [vmem:[#allocation11 + $0xf0] sm:$0xff]
    %v954 = vld [vmem:[#allocation11 + $0xf8] sm:$0xff]
    %v955 = vld [vmem:[#allocation11 + $0x100] sm:$0xff]
    %v956 = vld [vmem:[#allocation11 + $0x108] sm:$0xff]
    %v957 = vld [vmem:[#allocation11 + $0x110] sm:$0xff]
    %v958 = vld [vmem:[#allocation11 + $0x118] sm:$0xff]
    %v959 = vld [vmem:[#allocation11 + $0x120] sm:$0xff]
    %v960 = vld [vmem:[#allocation11 + $0x128] sm:$0xff]
    %v961 = vld [vmem:[#allocation11 + $0x130] sm:$0xff]
    %v962 = vld [vmem:[#allocation11 + $0x138] sm:$0xff]
    %v963 = vld [vmem:[#allocation11 + $0x140] sm:$0xff]
    %v964 = vld [vmem:[#allocation11 + $0x148] sm:$0xff]
    %v965 = vld [vmem:[#allocation11 + $0x150] sm:$0xff]
    %v966 = vld [vmem:[#allocation11 + $0x158] sm:$0xff]
    %v967 = vld [vmem:[#allocation11 + $0x160] sm:$0xff]
    %v968 = vld [vmem:[#allocation11 + $0x168] sm:$0xff]
    %v969 = vld [vmem:[#allocation11 + $0x170] sm:$0xff]
    %v970 = vld [vmem:[#allocation11 + $0x178] sm:$0xff]
    %v971 = vld [vmem:[#allocation11 + $0x180] sm:$0xff]
    %v972 = vld [vmem:[#allocation11 + $0x188] sm:$0xff]
    %v973 = vld [vmem:[#allocation11 + $0x190] sm:$0xff]
    %v974 = vld [vmem:[#allocation11 + $0x198] sm:$0xff]
    %v975 = vld [vmem:[#allocation11 + $0x1a0] sm:$0xff]
    %v976 = vld [vmem:[#allocation11 + $0x1a8] sm:$0xff]
    %v977 = vld [vmem:[#allocation11 + $0x1b0] sm:$0xff]
    %v978 = vld [vmem:[#allocation11 + $0x1b8] sm:$0xff]
    %v979 = vld [vmem:[#allocation11 + $0x1c0] sm:$0xff]
    %v980 = vld [vmem:[#allocation11 + $0x1c8] sm:$0xff]
    %v981 = vld [vmem:[#allocation11 + $0x1d0] sm:$0xff]
    %v982 = vld [vmem:[#allocation11 + $0x1d8] sm:$0xff]
    %v983 = vld [vmem:[#allocation11 + $0x1e0] sm:$0xff]
    %v984 = vld [vmem:[#allocation11 + $0x1e8] sm:$0xff]
    %v985 = vld [vmem:[#allocation11 + $0x1f0] sm:$0xff]
    %v986 = vld [vmem:[#allocation11 + $0x1f8] sm:$0xff]
    %v987 = vld [vmem:[#allocation11 + $0x200] sm:$0xff]
    %v988 = vld [vmem:[#allocation11 + $0x208] sm:$0xff]
    %v989 = vld [vmem:[#allocation11 + $0x210] sm:$0xff]
    %v990 = vld [vmem:[#allocation11 + $0x218] sm:$0xff]
    %v991 = vld [vmem:[#allocation11 + $0x220] sm:$0xff]
    %v992 = vld [vmem:[#allocation11 + $0x228] sm:$0xff]
    %v993 = vld [vmem:[#allocation11 + $0x230] sm:$0xff]
    %v994 = vld [vmem:[#allocation11 + $0x238] sm:$0xff]
    %v995 = vld [vmem:[#allocation11 + $0x240] sm:$0xff]
    %v996 = vld [vmem:[#allocation11 + $0x248] sm:$0xff]
    %v997 = vld [vmem:[#allocation11 + $0x250] sm:$0xff]
    %v998 = vld [vmem:[#allocation11 + $0x258] sm:$0xff]
    %v999 = vld [vmem:[#allocation11 + $0x260] sm:$0xff]
    %v1000 = vld [vmem:[#allocation11 + $0x268] sm:$0xff]
    %v1001 = vld [vmem:[#allocation11 + $0x270] sm:$0xff]
    %v1002 = vld [vmem:[#allocation11 + $0x278] sm:$0xff]
    %v1003 = vld [vmem:[#allocation11 + $0x280] sm:$0xff]
    %v1004 = vld [vmem:[#allocation11 + $0x288] sm:$0xff]
    %v1005 = vld [vmem:[#allocation11 + $0x290] sm:$0xff]
    %v1006 = vld [vmem:[#allocation11 + $0x298] sm:$0xff]
    %v1007 = vld [vmem:[#allocation11 + $0x2a0] sm:$0xff]
    %v1008 = vld [vmem:[#allocation11 + $0x2a8] sm:$0xff]
    %v1009 = vld [vmem:[#allocation11 + $0x2b0] sm:$0xff]
    %v1010 = vld [vmem:[#allocation11 + $0x2b8] sm:$0xff]
    %v1011 = vld [vmem:[#allocation11 + $0x2c0] sm:$0xff]
    %v1012 = vld [vmem:[#allocation11 + $0x2c8] sm:$0xff]
    %v1013 = vld [vmem:[#allocation11 + $0x2d0] sm:$0xff]
    %v1014 = vld [vmem:[#allocation11 + $0x2d8] sm:$0xff]
    %v1015 = vld [vmem:[#allocation11 + $0x2e0] sm:$0xff]
    %v1016 = vld [vmem:[#allocation11 + $0x2e8] sm:$0xff]
    %v1017 = vld [vmem:[#allocation11 + $0x2f0] sm:$0xff]
    %v1018 = vld [vmem:[#allocation11 + $0x2f8] sm:$0xff]
    %v1019 = vld [vmem:[#allocation11 + $0x300] sm:$0xff]
    %v1020 = vld [vmem:[#allocation11 + $0x308] sm:$0xff]
    %v1021 = vld [vmem:[#allocation11 + $0x310] sm:$0xff]
    %v1022 = vld [vmem:[#allocation11 + $0x318] sm:$0xff]
    %v1023 = vld [vmem:[#allocation11 + $0x320] sm:$0xff]
    %v1024 = vld [vmem:[#allocation11 + $0x328] sm:$0xff]
    %v1025 = vld [vmem:[#allocation11 + $0x330] sm:$0xff]
    %v1026 = vld [vmem:[#allocation11 + $0x338] sm:$0xff]
    %v1027 = vld [vmem:[#allocation11 + $0x340] sm:$0xff]
    %v1028 = vld [vmem:[#allocation11 + $0x348] sm:$0xff]
    %v1029 = vld [vmem:[#allocation11 + $0x350] sm:$0xff]
    %v1030 = vld [vmem:[#allocation11 + $0x358] sm:$0xff]
    %v1031 = vld [vmem:[#allocation11 + $0x360] sm:$0xff]
    %v1032 = vld [vmem:[#allocation11 + $0x368] sm:$0xff]
    %v1033 = vld [vmem:[#allocation11 + $0x370] sm:$0xff]
    %v1034 = vld [vmem:[#allocation11 + $0x378] sm:$0xff]
    %v1035 = vld [vmem:[#allocation11 + $0x380] sm:$0xff]
    %v1036 = vld [vmem:[#allocation11 + $0x388] sm:$0xff]
    %v1037 = vld [vmem:[#allocation11 + $0x390] sm:$0xff]
    %v1038 = vld [vmem:[#allocation11 + $0x398] sm:$0xff]
    %v1039 = vld [vmem:[#allocation11 + $0x3a0] sm:$0xff]
    %v1040 = vld [vmem:[#allocation11 + $0x3a8] sm:$0xff]
    %v1041 = vld [vmem:[#allocation11 + $0x3b0] sm:$0xff]
    %v1042 = vld [vmem:[#allocation11 + $0x3b8] sm:$0xff]
    %v1043 = vld [vmem:[#allocation11 + $0x3c0] sm:$0xff]
    %v1044 = vld [vmem:[#allocation11 + $0x3c8] sm:$0xff]
    %v1045 = vld [vmem:[#allocation11 + $0x3d0] sm:$0xff]
    %v1046 = vld [vmem:[#allocation11 + $0x3d8] sm:$0xff]
    %v1047 = vld [vmem:[#allocation11 + $0x3e0] sm:$0xff]
    %v1048 = vld [vmem:[#allocation11 + $0x3e8] sm:$0xff]
    %v1049 = vld [vmem:[#allocation11 + $0x3f0] sm:$0xff]
    %v1050 = vld [vmem:[#allocation11 + $0x3f8] sm:$0xff]
    %v1051 = vld [vmem:[#allocation11 + $0x400] sm:$0xff]
    %v1052 = vld [vmem:[#allocation11 + $0x408] sm:$0xff]
    %v1053 = vld [vmem:[#allocation11 + $0x410] sm:$0xff]
    %v1054 = vld [vmem:[#allocation11 + $0x418] sm:$0xff]
    %v1055 = vld [vmem:[#allocation11 + $0x420] sm:$0xff]
    %v1056 = vld [vmem:[#allocation11 + $0x428] sm:$0xff]
    %v1057 = vld [vmem:[#allocation11 + $0x430] sm:$0xff]
    %v1058 = vld [vmem:[#allocation11 + $0x438] sm:$0xff]
    %v1059 = vld [vmem:[#allocation11 + $0x440] sm:$0xff]
    %v1060 = vld [vmem:[#allocation11 + $0x448] sm:$0xff]
    %v1061 = vld [vmem:[#allocation11 + $0x450] sm:$0xff]
    %v1062 = vld [vmem:[#allocation11 + $0x458] sm:$0xff]
    %v1063 = vld [vmem:[#allocation11 + $0x460] sm:$0xff]
    %v1064 = vld [vmem:[#allocation11 + $0x468] sm:$0xff]
    %v1065 = vld [vmem:[#allocation11 + $0x470] sm:$0xff]
    %v1066 = vld [vmem:[#allocation11 + $0x478] sm:$0xff]
    %v1067 = vld [vmem:[%s5] sm:$0x1]
    %v1069 = vlaneseq
    %v1070 = vshrl.u32 %v1069, 7
    %v1071 = vsub.s32 0, %v1070
    %v1072 = vrot.slane %v1067, %v1071
    %1074 = vmatprep.subr.mxu0 0.0
    %1075 = vmatpush1.msra.mxu0 %v938
    %1076 = vmatprep.subr.mxu0 0.0
    %1077 = vmatpush1.msra.mxu0 %v937
    %1078 = vmatprep.subr.mxu0 0.0
    %1079 = vmatpush1.msra.mxu0 %v936
    %1080 = vmatprep.subr.mxu0 0.0
    %1081 = vmatpush1.msra.mxu0 %v935
    %1082 = vmatprep.subr.mxu0 0.0
    %1083 = vmatpush1.msra.mxu0 %v934
    %1084 = vmatprep.subr.mxu0 0.0
    %1085 = vmatpush1.msra.mxu0 %v933
    %1086 = vmatprep.subr.mxu0 0.0
    %1087 = vmatpush1.msra.mxu0 %v932
    %1088 = vmatprep.subr.mxu0 0.0
    %1089 = vmatpush1.msra.mxu0 %v931
    %1090 = vmatprep.subr.mxu0 0.0
    %1091 = vmatpush1.msra.mxu0 %v930
    %1092 = vmatprep.subr.mxu0 0.0
    %1093 = vmatpush1.msra.mxu0 %v929
    %1094 = vmatprep.subr.mxu0 0.0
    %1095 = vmatpush1.msra.mxu0 %v928
    %1096 = vmatprep.subr.mxu0 0.0
    %1097 = vmatpush1.msra.mxu0 %v927
    %1098 = vmatprep.subr.mxu0 0.0
    %1099 = vmatpush1.msra.mxu0 %v926
    %1100 = vmatprep.subr.mxu0 0.0
    %1101 = vmatpush1.msra.mxu0 %v925
    %1102 = vmatprep.subr.mxu0 0.0
    %1103 = vmatpush1.msra.mxu0 %v924
    %1104 = vmatprep.subr.mxu0 0.0
    %1105 = vmatpush1.msra.mxu0 %v923
    %1106 = vmatprep.subr.mxu0 0.0
    %1107 = vmatpush2.msra.mxu0 %v954
    %1108 = vmatprep.subr.mxu0 0.0
    %1109 = vmatpush2.msra.mxu0 %v953
    %1110 = vmatprep.subr.mxu0 0.0
    %1111 = vmatpush2.msra.mxu0 %v952
    %1112 = vmatprep.subr.mxu0 0.0
    %1113 = vmatpush2.msra.mxu0 %v951
    %1114 = vmatprep.subr.mxu0 0.0
    %1115 = vmatpush2.msra.mxu0 %v950
    %1116 = vmatprep.subr.mxu0 0.0
    %1117 = vmatpush2.msra.mxu0 %v949
    %1118 = vmatprep.subr.mxu0 0.0
    %1119 = vmatpush2.msra.mxu0 %v948
    %1120 = vmatprep.subr.mxu0 0.0
    %1121 = vmatpush2.msra.mxu0 %v947
    %1122 = vmatprep.subr.mxu0 0.0
    %1123 = vmatpush2.msra.mxu0 %v946
    %1124 = vmatprep.subr.mxu0 0.0
    %1125 = vmatpush2.msra.mxu0 %v945
    %1126 = vmatprep.subr.mxu0 0.0
    %1127 = vmatpush2.msra.mxu0 %v944
    %1128 = vmatprep.subr.mxu0 0.0
    %1129 = vmatpush2.msra.mxu0 %v943
    %1130 = vmatprep.subr.mxu0 0.0
    %1131 = vmatpush2.msra.mxu0 %v942
    %1132 = vmatprep.subr.mxu0 0.0
    %1133 = vmatpush2.msra.mxu0 %v941
    %1134 = vmatprep.subr.mxu0 0.0
    %1135 = vmatpush2.msra.mxu0 %v940
    %1136 = vmatprep.subr.mxu0 0.0
    %1137 = vmatpush2.msra.mxu0 %v939
    %1138 = vmatprep.mubr.f32.mxu0 %v915
    %1139 = vmatmul.mubr.f32.gmra.mxu0 %v914
    %v1140 = vpop.f32.mrf.mxu0
    %v1141 = vadd.f32 %v1072, %v1140
    %v1142 = vpop.f32.mrf.mxu0
    %1143 = vdwg.mxu0
    %1144 = vmatprep.subr.mxu0 0.0
    %1145 = vmatpush1.msra.mxu0 %v970
    %1146 = vmatprep.subr.mxu0 0.0
    %1147 = vmatpush1.msra.mxu0 %v969
    %1148 = vmatprep.subr.mxu0 0.0
    %1149 = vmatpush1.msra.mxu0 %v968
    %1150 = vmatprep.subr.mxu0 0.0
    %1151 = vmatpush1.msra.mxu0 %v967
    %1152 = vmatprep.subr.mxu0 0.0
    %1153 = vmatpush1.msra.mxu0 %v966
    %1154 = vmatprep.subr.mxu0 0.0
    %1155 = vmatpush1.msra.mxu0 %v965
    %1156 = vmatprep.subr.mxu0 0.0
    %1157 = vmatpush1.msra.mxu0 %v964
    %1158 = vmatprep.subr.mxu0 0.0
    %1159 = vmatpush1.msra.mxu0 %v963
    %1160 = vmatprep.subr.mxu0 0.0
    %1161 = vmatpush1.msra.mxu0 %v962
    %1162 = vmatprep.subr.mxu0 0.0
    %1163 = vmatpush1.msra.mxu0 %v961
    %1164 = vmatprep.subr.mxu0 0.0
    %1165 = vmatpush1.msra.mxu0 %v960
    %1166 = vmatprep.subr.mxu0 0.0
    %1167 = vmatpush1.msra.mxu0 %v959
    %1168 = vmatprep.subr.mxu0 0.0
    %1169 = vmatpush1.msra.mxu0 %v958
    %1170 = vmatprep.subr.mxu0 0.0
    %1171 = vmatpush1.msra.mxu0 %v957
    %1172 = vmatprep.subr.mxu0 0.0
    %1173 = vmatpush1.msra.mxu0 %v956
    %1174 = vmatprep.subr.mxu0 0.0
    %1175 = vmatpush1.msra.mxu0 %v955
    %1176 = vmatprep.subr.mxu0 0.0
    %1177 = vmatpush2.msra.mxu0 %v986
    %1178 = vmatprep.subr.mxu0 0.0
    %1179 = vmatpush2.msra.mxu0 %v985
    %1180 = vmatprep.subr.mxu0 0.0
    %1181 = vmatpush2.msra.mxu0 %v984
    %1182 = vmatprep.subr.mxu0 0.0
    %1183 = vmatpush2.msra.mxu0 %v983
    %1184 = vmatprep.subr.mxu0 0.0
    %1185 = vmatpush2.msra.mxu0 %v982
    %1186 = vmatprep.subr.mxu0 0.0
    %1187 = vmatpush2.msra.mxu0 %v981
    %1188 = vmatprep.subr.mxu0 0.0
    %1189 = vmatpush2.msra.mxu0 %v980
    %1190 = vmatprep.subr.mxu0 0.0
    %1191 = vmatpush2.msra.mxu0 %v979
    %1192 = vmatprep.subr.mxu0 0.0
    %1193 = vmatpush2.msra.mxu0 %v978
    %1194 = vmatprep.subr.mxu0 0.0
    %1195 = vmatpush2.msra.mxu0 %v977
    %1196 = vmatprep.subr.mxu0 0.0
    %1197 = vmatpush2.msra.mxu0 %v976
    %1198 = vmatprep.subr.mxu0 0.0
    %1199 = vmatpush2.msra.mxu0 %v975
    %1200 = vmatprep.subr.mxu0 0.0
    %1201 = vmatpush2.msra.mxu0 %v974
    %1202 = vmatprep.subr.mxu0 0.0
    %1203 = vmatpush2.msra.mxu0 %v973
    %1204 = vmatprep.subr.mxu0 0.0
    %1205 = vmatpush2.msra.mxu0 %v972
    %1206 = vmatprep.subr.mxu0 0.0
    %1207 = vmatpush2.msra.mxu0 %v971
    %1208 = vmatprep.mubr.f32.mxu0 %v917
    %1209 = vmatmul.mubr.f32.gmra.mxu0 %v916
    %v1210 = vpop.f32.mrf.mxu0
    %v1211 = vadd.f32 %v1141, %v1210
    %v1212 = vpop.f32.mrf.mxu0
    %1213 = vdwg.mxu0
    %1214 = vmatprep.subr.mxu0 0.0
    %1215 = vmatpush1.msra.mxu0 %v1002
    %1216 = vmatprep.subr.mxu0 0.0
    %1217 = vmatpush1.msra.mxu0 %v1001
    %1218 = vmatprep.subr.mxu0 0.0
    %1219 = vmatpush1.msra.mxu0 %v1000
    %1220 = vmatprep.subr.mxu0 0.0
    %1221 = vmatpush1.msra.mxu0 %v999
    %1222 = vmatprep.subr.mxu0 0.0
    %1223 = vmatpush1.msra.mxu0 %v998
    %1224 = vmatprep.subr.mxu0 0.0
    %1225 = vmatpush1.msra.mxu0 %v997
    %1226 = vmatprep.subr.mxu0 0.0
    %1227 = vmatpush1.msra.mxu0 %v996
    %1228 = vmatprep.subr.mxu0 0.0
    %1229 = vmatpush1.msra.mxu0 %v995
    %1230 = vmatprep.subr.mxu0 0.0
    %1231 = vmatpush1.msra.mxu0 %v994
    %1232 = vmatprep.subr.mxu0 0.0
    %1233 = vmatpush1.msra.mxu0 %v993
    %1234 = vmatprep.subr.mxu0 0.0
    %1235 = vmatpush1.msra.mxu0 %v992
    %1236 = vmatprep.subr.mxu0 0.0
    %1237 = vmatpush1.msra.mxu0 %v991
    %1238 = vmatprep.subr.mxu0 0.0
    %1239 = vmatpush1.msra.mxu0 %v990
    %1240 = vmatprep.subr.mxu0 0.0
    %1241 = vmatpush1.msra.mxu0 %v989
    %1242 = vmatprep.subr.mxu0 0.0
    %1243 = vmatpush1.msra.mxu0 %v988
    %1244 = vmatprep.subr.mxu0 0.0
    %1245 = vmatpush1.msra.mxu0 %v987
    %1246 = vmatprep.subr.mxu0 0.0
    %1247 = vmatpush2.msra.mxu0 %v1018
    %1248 = vmatprep.subr.mxu0 0.0
    %1249 = vmatpush2.msra.mxu0 %v1017
    %1250 = vmatprep.subr.mxu0 0.0
    %1251 = vmatpush2.msra.mxu0 %v1016
    %1252 = vmatprep.subr.mxu0 0.0
    %1253 = vmatpush2.msra.mxu0 %v1015
    %1254 = vmatprep.subr.mxu0 0.0
    %1255 = vmatpush2.msra.mxu0 %v1014
    %1256 = vmatprep.subr.mxu0 0.0
    %1257 = vmatpush2.msra.mxu0 %v1013
    %1258 = vmatprep.subr.mxu0 0.0
    %1259 = vmatpush2.msra.mxu0 %v1012
    %1260 = vmatprep.subr.mxu0 0.0
    %1261 = vmatpush2.msra.mxu0 %v1011
    %1262 = vmatprep.subr.mxu0 0.0
    %1263 = vmatpush2.msra.mxu0 %v1010
    %1264 = vmatprep.subr.mxu0 0.0
    %1265 = vmatpush2.msra.mxu0 %v1009
    %1266 = vmatprep.subr.mxu0 0.0
    %1267 = vmatpush2.msra.mxu0 %v1008
    %1268 = vmatprep.subr.mxu0 0.0
    %1269 = vmatpush2.msra.mxu0 %v1007
    %1270 = vmatprep.subr.mxu0 0.0
    %1271 = vmatpush2.msra.mxu0 %v1006
    %1272 = vmatprep.subr.mxu0 0.0
    %1273 = vmatpush2.msra.mxu0 %v1005
    %1274 = vmatprep.subr.mxu0 0.0
    %1275 = vmatpush2.msra.mxu0 %v1004
    %1276 = vmatprep.subr.mxu0 0.0
    %1277 = vmatpush2.msra.mxu0 %v1003
    %1278 = vmatprep.mubr.f32.mxu0 %v919
    %1279 = vmatmul.mubr.f32.gmra.mxu0 %v918
    %v1280 = vpop.f32.mrf.mxu0
    %v1281 = vadd.f32 %v1211, %v1280
    %v1282 = vpop.f32.mrf.mxu0
    %1283 = vdwg.mxu0
    %1284 = vmatprep.subr.mxu0 0.0
    %1285 = vmatpush1.msra.mxu0 %v1034
    %1286 = vmatprep.subr.mxu0 0.0
    %1287 = vmatpush1.msra.mxu0 %v1033
    %1288 = vmatprep.subr.mxu0 0.0
    %1289 = vmatpush1.msra.mxu0 %v1032
    %1290 = vmatprep.subr.mxu0 0.0
    %1291 = vmatpush1.msra.mxu0 %v1031
    %1292 = vmatprep.subr.mxu0 0.0
    %1293 = vmatpush1.msra.mxu0 %v1030
    %1294 = vmatprep.subr.mxu0 0.0
    %1295 = vmatpush1.msra.mxu0 %v1029
    %1296 = vmatprep.subr.mxu0 0.0
    %1297 = vmatpush1.msra.mxu0 %v1028
    %1298 = vmatprep.subr.mxu0 0.0
    %1299 = vmatpush1.msra.mxu0 %v1027
    %1300 = vmatprep.subr.mxu0 0.0
    %1301 = vmatpush1.msra.mxu0 %v1026
    %1302 = vmatprep.subr.mxu0 0.0
    %1303 = vmatpush1.msra.mxu0 %v1025
    %1304 = vmatprep.subr.mxu0 0.0
    %1305 = vmatpush1.msra.mxu0 %v1024
    %1306 = vmatprep.subr.mxu0 0.0
    %1307 = vmatpush1.msra.mxu0 %v1023
    %1308 = vmatprep.subr.mxu0 0.0
    %1309 = vmatpush1.msra.mxu0 %v1022
    %1310 = vmatprep.subr.mxu0 0.0
    %1311 = vmatpush1.msra.mxu0 %v1021
    %1312 = vmatprep.subr.mxu0 0.0
    %1313 = vmatpush1.msra.mxu0 %v1020
    %1314 = vmatprep.subr.mxu0 0.0
    %1315 = vmatpush1.msra.mxu0 %v1019
    %1316 = vmatprep.subr.mxu0 0.0
    %1317 = vmatpush2.msra.mxu0 %v1050
    %1318 = vmatprep.subr.mxu0 0.0
    %1319 = vmatpush2.msra.mxu0 %v1049
    %1320 = vmatprep.subr.mxu0 0.0
    %1321 = vmatpush2.msra.mxu0 %v1048
    %1322 = vmatprep.subr.mxu0 0.0
    %1323 = vmatpush2.msra.mxu0 %v1047
    %1324 = vmatprep.subr.mxu0 0.0
    %1325 = vmatpush2.msra.mxu0 %v1046
    %1326 = vmatprep.subr.mxu0 0.0
    %1327 = vmatpush2.msra.mxu0 %v1045
    %1328 = vmatprep.subr.mxu0 0.0
    %1329 = vmatpush2.msra.mxu0 %v1044
    %1330 = vmatprep.subr.mxu0 0.0
    %1331 = vmatpush2.msra.mxu0 %v1043
    %1332 = vmatprep.subr.mxu0 0.0
    %1333 = vmatpush2.msra.mxu0 %v1042
    %1334 = vmatprep.subr.mxu0 0.0
    %1335 = vmatpush2.msra.mxu0 %v1041
    %1336 = vmatprep.subr.mxu0 0.0
    %1337 = vmatpush2.msra.mxu0 %v1040
    %1338 = vmatprep.subr.mxu0 0.0
    %1339 = vmatpush2.msra.mxu0 %v1039
    %1340 = vmatprep.subr.mxu0 0.0
    %1341 = vmatpush2.msra.mxu0 %v1038
    %1342 = vmatprep.subr.mxu0 0.0
    %1343 = vmatpush2.msra.mxu0 %v1037
    %1344 = vmatprep.subr.mxu0 0.0
    %1345 = vmatpush2.msra.mxu0 %v1036
    %1346 = vmatprep.subr.mxu0 0.0
    %1347 = vmatpush2.msra.mxu0 %v1035
    %1348 = vmatprep.mubr.f32.mxu0 %v921
    %1349 = vmatmul.mubr.f32.gmra.mxu0 %v920
    %v1350 = vpop.f32.mrf.mxu0
    %v1351 = vadd.f32 %v1281, %v1350
    %v1352 = vpop.f32.mrf.mxu0
    %1353 = vdwg.mxu0
    %1354 = vmatprep.subr.mxu0 0.0
    %1355 = vmatpush1.msra.mxu0 %v1066
    %1356 = vmatprep.subr.mxu0 0.0
    %1357 = vmatpush1.msra.mxu0 %v1065
    %1358 = vmatprep.subr.mxu0 0.0
    %1359 = vmatpush1.msra.mxu0 %v1064
    %1360 = vmatprep.subr.mxu0 0.0
    %1361 = vmatpush1.msra.mxu0 %v1063
    %1362 = vmatprep.subr.mxu0 0.0
    %1363 = vmatpush1.msra.mxu0 %v1062
    %1364 = vmatprep.subr.mxu0 0.0
    %1365 = vmatpush1.msra.mxu0 %v1061
    %1366 = vmatprep.subr.mxu0 0.0
    %1367 = vmatpush1.msra.mxu0 %v1060
    %1368 = vmatprep.subr.mxu0 0.0
    %1369 = vmatpush1.msra.mxu0 %v1059
    %1370 = vmatprep.subr.mxu0 0.0
    %1371 = vmatpush1.msra.mxu0 %v1058
    %1372 = vmatprep.subr.mxu0 0.0
    %1373 = vmatpush1.msra.mxu0 %v1057
    %1374 = vmatprep.subr.mxu0 0.0
    %1375 = vmatpush1.msra.mxu0 %v1056
    %1376 = vmatprep.subr.mxu0 0.0
    %1377 = vmatpush1.msra.mxu0 %v1055
    %1378 = vmatprep.subr.mxu0 0.0
    %1379 = vmatpush1.msra.mxu0 %v1054
    %1380 = vmatprep.subr.mxu0 0.0
    %1381 = vmatpush1.msra.mxu0 %v1053
    %1382 = vmatprep.subr.mxu0 0.0
    %1383 = vmatpush1.msra.mxu0 %v1052
    %1384 = vmatprep.subr.mxu0 0.0
    %1385 = vmatpush1.msra.mxu0 %v1051
    %1386 = vmatprep.subr.mxu0 0.0
    %1387 = vmatpush2.msra.mxu0 0.0
    %1388 = vmatprep.subr.mxu0 0.0
    %1389 = vmatpush2.msra.mxu0 0.0
    %1390 = vmatprep.subr.mxu0 0.0
    %1391 = vmatpush2.msra.mxu0 0.0
    %1392 = vmatprep.subr.mxu0 0.0
    %1393 = vmatpush2.msra.mxu0 0.0
    %1394 = vmatprep.subr.mxu0 0.0
    %1395 = vmatpush2.msra.mxu0 0.0
    %1396 = vmatprep.subr.mxu0 0.0
    %1397 = vmatpush2.msra.mxu0 0.0
    %1398 = vmatprep.subr.mxu0 0.0
    %1399 = vmatpush2.msra.mxu0 0.0
    %1400 = vmatprep.subr.mxu0 0.0
    %1401 = vmatpush2.msra.mxu0 0.0
    %1402 = vmatprep.subr.mxu0 0.0
    %1403 = vmatpush2.msra.mxu0 0.0
    %1404 = vmatprep.subr.mxu0 0.0
    %1405 = vmatpush2.msra.mxu0 0.0
    %1406 = vmatprep.subr.mxu0 0.0
    %1407 = vmatpush2.msra.mxu0 0.0
    %1408 = vmatprep.subr.mxu0 0.0
    %1409 = vmatpush2.msra.mxu0 0.0
    %1410 = vmatprep.subr.mxu0 0.0
    %1411 = vmatpush2.msra.mxu0 0.0
    %1412 = vmatprep.subr.mxu0 0.0
    %1413 = vmatpush2.msra.mxu0 0.0
    %1414 = vmatprep.subr.mxu0 0.0
    %1415 = vmatpush2.msra.mxu0 0.0
    %1416 = vmatprep.subr.mxu0 0.0
    %1417 = vmatpush2.msra.mxu0 0.0
    %1418 = vmatprep.mubr.f32.mxu0 0.0
    %1419 = vmatmul.mubr.f32.gmra.mxu0 %v922
    %v1420 = vpop.f32.mrf.mxu0
    %v1421 = vadd.f32 %v1351, %v1420
    %v1422 = vpop.f32.mrf.mxu0
    %1423 = vdwg.mxu0
    %1424 = vst [vmem:[#allocation12] sm:$0xff] %v1421
    // Predicated region
    $region46: #{tpu_custom_call.1} parent=1 // pred_check
      _
    $region47: #{tpu_custom_call.1} parent=1 // pred_check_branch
      %1426 = sbr.rel (0) target = $region49
    $region48: #{tpu_custom_call.1} parent=1 // pred_region
      %s1428 = ssub.s32 128, 128
      %1429 = vsyncadd [#allocation4], %s1428
      %s1431 = sshll.u32 [#allocation12], 4
      %s1432 = int_to_ptr.vmem [resolvable:$true] %s1431
      %1434 = dma.vmem_to_hbm [thread:$0]  %s1432, 128, %s6, [#allocation4]
    $region49: #{tpu_custom_call.1} parent=1 // pred_fallthru
      _
    // Predicated region
    $region50: #{tpu_custom_call.1} parent=1 // pred_check
      _
    $region51: #{tpu_custom_call.1} parent=1 // pred_check_branch
      %1436 = sbr.rel (0) target = $region53
    $region52: #{tpu_custom_call.1} parent=1 // pred_region
      %1437 = dma.done [#allocation4], 128
    $region53: #{tpu_custom_call.1} parent=1 // pred_fallthru
      _
    %1438 = vsyncpa [#allocation3], 1
    %1439 = vsyncpa [#allocation7], 1
    %1440 = vsyncpa [#allocation4], 1
    %1441 = vsyncpa [#allocation5], 1
    %1442 = vsyncpa [#allocation10], 1

</llo_original>
